<compile_context>
chip_gen: v7x
topology: tpu7x:2x2x1
jax: 0.10.0
libtpu: 0.0.40
codegen_flags: <defaults>
</compile_context>

<pallas_src>
import functools

import jax
import jax.numpy as jnp
from jax import lax
from jax.experimental import pallas as pl
from jax.experimental.pallas import tpu as pltpu


# ---------------------------------------------------------------------------
# Pallas kernel: recurrent part of one LSTM layer
# ---------------------------------------------------------------------------
def lstm_recurrent_kernel(gx_ref, wh_ref, h0_ref, c0_ref,
                          out_ref, cN_ref, h_scr, c_scr, *,
                          seq, needs_mask):
    """One grid step = t_block time steps of one batch block (recurrence only).

    grid = (batch_blocks [parallel], time_blocks [arbitrary/serial])

    gx_ref : (t_block, bs_blk, 4*hc_p)  precomputed x @ Wi^T + b (padded)
    wh_ref : (hc_p, 4*hc_p)             hidden->gates weight (single-buffered)
    h0/c0  : (bs_blk, hc_p)             initial state for this batch block
    out_ref: (t_block, bs_blk, hc_p)    per-timestep hidden output
    cN_ref : (bs_blk, hc_p)             final cell state (written on last tb)
    h_scr/c_scr : VMEM scratch carrying the recurrent state across time blocks.
    """
    t_block = out_ref.shape[0]
    hc_p = h_scr.shape[-1]
    tb = pl.program_id(1)  # serial time-block index

    @pl.when(tb == 0)
    def _():
        # New batch block starts: (re)load the initial state.
        h_scr[...] = h0_ref[...]
        c_scr[...] = c0_ref[...]

    def step(t, carry):
        h_prev, c_prev = carry
        # Stream Wh from VMEM each step (no vreg-resident hoist of the full
        # weight tile — that held ~64 vregs live across the unrolled loop).
        gates = gx_ref[t] + jnp.dot(h_prev.astype(wh_ref.dtype), wh_ref[...],
                                    preferred_element_type=jnp.float32)
        # [f | i | o] are all sigmoid -> one wide activation over 3*hc_p lanes.
        sig = jax.nn.sigmoid(gates[:, :3 * hc_p])
        g = jnp.tanh(gates[:, 3 * hc_p:])
        f = sig[:, 0 * hc_p:1 * hc_p]
        i = sig[:, 1 * hc_p:2 * hc_p]
        o = sig[:, 2 * hc_p:3 * hc_p]
        c_new = c_prev * f + g * i
        h_new = o * jnp.tanh(c_new)
        out_ref[t] = h_new.astype(out_ref.dtype)
        if needs_mask:
            # Padded tail time steps must not advance the carried state
            # (gx=0 there would otherwise corrupt h/c and hence cN/hN).
            keep = (tb * t_block + t) < seq
            h_new = jnp.where(keep, h_new, h_prev)
            c_new = jnp.where(keep, c_new, c_prev)
        return (h_new, c_new)

    # Capped unroll: keeps LLO scheduling visibility without register blowup.
    h_fin, c_fin = lax.fori_loop(0, t_block, step,
                                 (h_scr[...], c_scr[...]),
                                 unroll=min(8, t_block))
    h_scr[...] = h_fin
    c_scr[...] = c_fin

    # Only the last time block emits the final cell state (no dead stores).
    @pl.when(tb == pl.num_programs(1) - 1)
    def _():
        cN_ref[...] = c_fin.astype(cN_ref.dtype)


# ---------------------------------------------------------------------------
# Wrapper helpers
# ---------------------------------------------------------------------------
def _round_up(x, m):
    return (x + m - 1) // m * m


def _vmem_budget_bytes():
    """~75% of physical VMEM (leaves headroom for compiler scratch)."""
    try:
        cap = pltpu.get_tpu_info().vmem_capacity_bytes
    except Exception:
        cap = 64 * 1024 * 1024  # conservative (v7x per-TC) fallback
    return int(cap) * 3 // 4, int(cap)


def _pick_t_block(seq, bs_blk, hc_p, wh_bytes, max_block, budget_bytes):
    """Largest time block whose (double-buffered) gx/out blocks fit VMEM."""
    per_step = bs_blk * 5 * hc_p * 4          # gx (4*hc_p) + out (hc_p), f32
    small = 8 * bs_blk * hc_p * 4             # h0/c0/cN buffers + h/c scratch
    avail = budget_bytes - 2 * wh_bytes - small
    by_vmem = max(1, avail // (2 * per_step))  # x2: double-buffered gx/out
    return int(max(1, min(max_block, seq, by_vmem)))


# ---------------------------------------------------------------------------
# One LSTM layer over the full sequence
# ---------------------------------------------------------------------------
def run_lstm_layer(x, wi_t, wh_t, b, h0, c0, *,
                   t_block_max=64, weights_dtype=jnp.float32):
    """x: (seq, bs, in_dim). wi_t: (in_dim, 4*hc). wh_t: (hc, 4*hc).
    b: (4*hc,). h0/c0: (bs, hc).
    Returns (out (seq, bs, hc), hN (bs, hc), cN (bs, hc))."""
    seq, bs, in_dim = x.shape
    hc = h0.shape[-1]
    bs_blk = 8                              # f32 sublane tile / batch block
    bs_p = _round_up(bs, bs_blk)
    hc_p = _round_up(hc, 128)               # lane tile
    num_bb = bs_p // bs_blk

    # --- Pad parameters to lane-dense layout BEFORE the projection matmul,
    #     so gx comes out already padded (no post-matmul scatter of gx). ---
    wi_p = jnp.zeros((in_dim, 4, hc_p), jnp.float32)
    wi_p = wi_p.at[:, :, :hc].set(wi_t.reshape(in_dim, 4, hc))
    wi_p = wi_p.reshape(in_dim, 4 * hc_p)
    b_p = jnp.zeros((4, hc_p), jnp.float32).at[:, :hc].set(
        b.reshape(4, hc)).reshape(4 * hc_p)
    wh_p = jnp.zeros((hc_p, 4, hc_p), jnp.float32)
    wh_p = wh_p.at[:hc, :, :hc].set(wh_t.reshape(hc, 4, hc))
    wh_p = wh_p.reshape(hc_p, 4 * hc_p).astype(weights_dtype)
    # (zero padded Wh rows/cols keep padded h lanes inert and exactly zero)

    # --- t_block / seq padding driven by the VMEM budget. ---
    wh_bytes = hc_p * 4 * hc_p * jnp.dtype(weights_dtype).itemsize
    budget, vmem_cap = _vmem_budget_bytes()
    t_block = _pick_t_block(seq, bs_blk, hc_p, wh_bytes, t_block_max, budget)
    seq_pad = _round_up(seq, t_block)
    needs_mask = seq_pad != seq
    grid_t = seq_pad // t_block

    # --- Pad x (the small tensor) in time/batch, then one big XLA matmul. ---
    x_p = jnp.zeros((seq_pad, bs_p, in_dim), jnp.float32)
    x_p = x_p.at[:seq, :bs, :].set(x)
    gx = jnp.dot(x_p.reshape(seq_pad * bs_p, in_dim), wi_p,
                 preferred_element_type=jnp.float32) + b_p
    gx = gx.reshape(seq_pad, bs_p, 4 * hc_p)          # already lane-padded

    h0_p = jnp.zeros((bs_p, hc_p), jnp.float32).at[:bs, :hc].set(h0)
    c0_p = jnp.zeros((bs_p, hc_p), jnp.float32).at[:bs, :hc].set(c0)

    # --- VMEM accounting -> explicit (but not full-physical) limit. ---
    gx_blk = t_block * bs_blk * 4 * hc_p * 4
    out_blk = t_block * bs_blk * hc_p * 4
    small = 8 * bs_blk * hc_p * 4
    need = 2 * (gx_blk + out_blk) + 2 * wh_bytes + small
    vmem_limit = int(min(max(need + (8 << 20), 24 << 20), vmem_cap * 7 // 8))

    kernel = functools.partial(lstm_recurrent_kernel,
                               seq=seq, needs_mask=needs_mask)

    grid_spec = pltpu.PrefetchScalarGridSpec(
        num_scalar_prefetch=0,
        grid=(num_bb, grid_t),
        in_specs=[
            # gx: streamed per (batch block, time block)
            pl.BlockSpec((t_block, bs_blk, 4 * hc_p), lambda bb, tb: (tb, bb, 0)),
            # Wh: constant index across the whole grid -> single-buffered
            pl.BlockSpec((hc_p, 4 * hc_p), lambda bb, tb: (0, 0),
                         pipeline_mode=pl.Buffered(1)),
            # h0 / c0: tiny, fetched once per batch block
            pl.BlockSpec((bs_blk, hc_p), lambda bb, tb: (bb, 0)),
            pl.BlockSpec((bs_blk, hc_p), lambda bb, tb: (bb, 0)),
        ],
        out_specs=[
            pl.BlockSpec((t_block, bs_blk, hc_p), lambda bb, tb: (tb, bb, 0)),
            pl.BlockSpec((bs_blk, hc_p), lambda bb, tb: (bb, 0)),
        ],
        scratch_shapes=[
            pltpu.VMEM((bs_blk, hc_p), jnp.float32),   # h carry
            pltpu.VMEM((bs_blk, hc_p), jnp.float32),   # c carry
        ],
    )

    out_p, cN_p = pl.pallas_call(
        kernel,
        out_shape=(jax.ShapeDtypeStruct((seq_pad, bs_p, hc_p), jnp.float32),
                   jax.ShapeDtypeStruct((bs_p, hc_p), jnp.float32)),
        grid_spec=grid_spec,
        compiler_params=pltpu.CompilerParams(
            # batch blocks are independent -> parallel (2 TCs on v7x);
            # time carries state -> arbitrary (serial).
            dimension_semantics=("parallel", "arbitrary"),
            vmem_limit_bytes=vmem_limit),
    )(gx, wh_p, h0_p, c0_p)

    out = out_p[:seq, :bs, :hc]
    hN = out[seq - 1]                 # final hidden == last per-step output
    cN = cN_p[:bs, :hc]
    return out, hN, cN


# ---------------------------------------------------------------------------
# Parameters / multi-layer forward / reference
# ---------------------------------------------------------------------------
def init_lstm_params(key, ic, hc, layer_num):
    """Deterministic PyTorch-style init: U(-1/sqrt(fan_in), 1/sqrt(fan_in))."""
    params = []
    for layer in range(layer_num):
        in_dim = ic if layer == 0 else hc
        key, k1, k2, k3, k4 = jax.random.split(key, 5)
        bound_i = 1.0 / jnp.sqrt(in_dim)
        bound_h = 1.0 / jnp.sqrt(hc)
        w_i = jax.random.uniform(k1, (4 * hc, in_dim), jnp.float32,
                                 -bound_i, bound_i)
        b_i = jax.random.uniform(k2, (4 * hc,), jnp.float32, -bound_i, bound_i)
        w_h = jax.random.uniform(k3, (4 * hc, hc), jnp.float32,
                                 -bound_h, bound_h)
        b_h = jax.random.uniform(k4, (4 * hc,), jnp.float32, -bound_h, bound_h)
        params.append({
            "wi_t": w_i.T,          # (in_dim, 4*hc)   gate order [f,i,o,g]
            "wh_t": w_h.T,          # (hc, 4*hc)
            "b": b_i + b_h,         # combined bias (4*hc,)
        })
    return params


def lstm_forward(x, params, hc, hiddens=None, *,
                 t_block_max=64, weights_dtype=jnp.float32):
    """Multi-layer LSTM forward matching the PyTorch module.

    x: (seq, bs, ic). Returns (out (seq,bs,hc), (hs (L,bs,hc), cs (L,bs,hc)))."""
    seq, bs, _ = x.shape
    layer_num = len(params)
    if hiddens is None:
        h = jnp.zeros((layer_num, bs, hc), jnp.float32)
        c = jnp.zeros((layer_num, bs, hc), jnp.float32)
    else:
        h, c = hiddens

    lstm_input = x
    hs, cs = [], []
    for i in range(layer_num):
        p = params[i]
        out, hN, cN = run_lstm_layer(lstm_input, p["wi_t"], p["wh_t"], p["b"],
                                     h[i], c[i], t_block_max=t_block_max,
                                     weights_dtype=weights_dtype)
        lstm_input = out
        hs.append(hN[None])
        cs.append(cN[None])
    return lstm_input, (jnp.concatenate(hs, axis=0), jnp.concatenate(cs, axis=0))


def lstm_reference(x, params, hc, hiddens=None):
    """Pure-JAX reference (mirrors the PyTorch loop) for validation."""
    seq, bs, _ = x.shape
    layer_num = len(params)
    if hiddens is None:
        h = jnp.zeros((layer_num, bs, hc), jnp.float32)
        c = jnp.zeros((layer_num, bs, hc), jnp.float32)
    else:
        h, c = hiddens

    lstm_input = x
    hs, cs = [], []
    for i in range(layer_num):
        p = params[i]
        cur_h, cur_c = h[i], c[i]
        outs = []
        for t in range(seq):
            gates = lstm_input[t] @ p["wi_t"] + cur_h @ p["wh_t"] + p["b"]
            f = jax.nn.sigmoid(gates[:, 0 * hc:1 * hc])
            ig = jax.nn.sigmoid(gates[:, 1 * hc:2 * hc])
            o = jax.nn.sigmoid(gates[:, 2 * hc:3 * hc])
            g = jnp.tanh(gates[:, 3 * hc:4 * hc])
            cur_c = cur_c * f + g * ig
            cur_h = o * jnp.tanh(cur_c)
            outs.append(cur_h[None])
        lstm_input = jnp.concatenate(outs, axis=0)
        hs.append(cur_h[None])
        cs.append(cur_c[None])
    return lstm_input, (jnp.concatenate(hs, axis=0), jnp.concatenate(cs, axis=0))


if __name__ == "__main__":
    seq, bs, ic, hc, layer_num = 8, 2, 4, 32, 2

    key = jax.random.PRNGKey(0)
    key, kx = jax.random.split(key)
    x = jax.random.normal(kx, (seq, bs, ic), jnp.float32)
    params = init_lstm_params(key, ic, hc, layer_num)

    # Pure-JAX reference of the PyTorch semantics.
    out_ref, (hs_ref, cs_ref) = lstm_reference(x, params, hc)

    # 1) Default path (t_block == seq, no time padding).
    out, (hs, cs) = lstm_forward(x, params, hc)
    out = jax.block_until_ready(out)
    hs = jax.block_until_ready(hs)
    cs = jax.block_until_ready(cs)
    assert out.shape == (seq, bs, hc)
    assert hs.shape == (layer_num, bs, hc) and cs.shape == (layer_num, bs, hc)
    assert jnp.allclose(out, out_ref, atol=1e-5, rtol=1e-5)
    assert jnp.allclose(hs, hs_ref, atol=1e-5, rtol=1e-5)
    assert jnp.allclose(cs, cs_ref, atol=1e-5, rtol=1e-5)

    # 2) Forced small t_block (3 does not divide seq=8) to exercise the
    #    padded-tail masking path.
    out2, (hs2, cs2) = lstm_forward(x, params, hc, t_block_max=3)
    out2 = jax.block_until_ready(out2)
    assert jnp.allclose(out2, out_ref, atol=1e-5, rtol=1e-5)
    assert jnp.allclose(hs2, hs_ref, atol=1e-5, rtol=1e-5)
    assert jnp.allclose(cs2, cs_ref, atol=1e-5, rtol=1e-5)

    print("KERNEL_OK")
</pallas_src>

<mosaic_0001>
module attributes {stable_mosaic.version = 11 : i64} {
  func.func @lstm_recurrent_kernel(%arg0: i32, %arg1: i32, %arg2: memref<8x8x512xf32, #tpu.memory_space<vmem>>, %arg3: memref<128x512xf32, #tpu.memory_space<vmem>>, %arg4: memref<8x128xf32, #tpu.memory_space<vmem>>, %arg5: memref<8x128xf32, #tpu.memory_space<vmem>>, %arg6: memref<8x8x128xf32, #tpu.memory_space<vmem>>, %arg7: memref<8x128xf32, #tpu.memory_space<vmem>>, %arg8: memref<8x128xf32, #tpu.memory_space<vmem>>, %arg9: memref<8x128xf32, #tpu.memory_space<vmem>>) attributes {dimension_semantics = [#tpu.dimension_semantics<parallel>, #tpu.dimension_semantics<arbitrary>], iteration_bounds = array<i64: 1, 1>, scalar_prefetch = 0 : i64, scratch_operands = 2 : i64, tpu.core_type = #tpu.core_type<tc>, window_params = [{transform_indices = @transform_0, window_bounds = array<i64: 8, 8, 512>}, {pipeline_mode = #tpu.pipeline_mode<synchronous>, transform_indices = @transform_1, window_bounds = array<i64: 128, 512>}, {transform_indices = @transform_2, window_bounds = array<i64: 8, 128>}, {transform_indices = @transform_3, window_bounds = array<i64: 8, 128>}, {transform_indices = @transform_4, window_bounds = array<i64: 8, 8, 128>}, {transform_indices = @transform_5, window_bounds = array<i64: 8, 128>}]} {
    %c0_i32 = arith.constant 0 : i32
    %0 = arith.cmpi eq, %arg1, %c0_i32 : i32
    %1 = arith.extui %0 : i1 to i32
    %c0_i32_0 = arith.constant 0 : i32
    %2 = arith.cmpi ne, %1, %c0_i32_0 : i32
    scf.if %2 {
      %c0_74 = arith.constant 0 : index
      %c0_75 = arith.constant 0 : index
      %218 = vector.load %arg4[%c0_74, %c0_75] : memref<8x128xf32, #tpu.memory_space<vmem>>, vector<8x128xf32>
      %c0_76 = arith.constant 0 : index
      %c0_77 = arith.constant 0 : index
      %219 = vector.load %arg8[%c0_76, %c0_77] : memref<8x128xf32, #tpu.memory_space<vmem>>, vector<8x128xf32>
      tpu.vector_store %arg8[%c0_76, %c0_77], %218 {strides = array<i32>} : memref<8x128xf32, #tpu.memory_space<vmem>>, vector<8x128xf32>,
      %c0_78 = arith.constant 0 : index
      %c0_79 = arith.constant 0 : index
      %220 = vector.load %arg5[%c0_78, %c0_79] : memref<8x128xf32, #tpu.memory_space<vmem>>, vector<8x128xf32>
      %c0_80 = arith.constant 0 : index
      %c0_81 = arith.constant 0 : index
      %221 = vector.load %arg9[%c0_80, %c0_81] : memref<8x128xf32, #tpu.memory_space<vmem>>, vector<8x128xf32>
      tpu.vector_store %arg9[%c0_80, %c0_81], %220 {strides = array<i32>} : memref<8x128xf32, #tpu.memory_space<vmem>>, vector<8x128xf32>,
    } else {
    }
    %c0 = arith.constant 0 : index
    %c0_1 = arith.constant 0 : index
    %3 = vector.load %arg8[%c0, %c0_1] : memref<8x128xf32, #tpu.memory_space<vmem>>, vector<8x128xf32>
    %c0_2 = arith.constant 0 : index
    %c0_3 = arith.constant 0 : index
    %4 = vector.load %arg9[%c0_2, %c0_3] : memref<8x128xf32, #tpu.memory_space<vmem>>, vector<8x128xf32>
    %c0_i32_4 = arith.constant 0 : i32
    %5 = arith.index_cast %c0_i32_4 : i32 to index
    %c0_5 = arith.constant 0 : index
    %c0_6 = arith.constant 0 : index
    %6 = vector.load %arg2[%5, %c0_5, %c0_6] : memref<8x8x512xf32, #tpu.memory_space<vmem>>, vector<1x8x512xf32>
    %7 = vector.shape_cast %6 : vector<1x8x512xf32> to vector<8x512xf32>
    %c0_7 = arith.constant 0 : index
    %c0_8 = arith.constant 0 : index
    %8 = vector.load %arg3[%c0_7, %c0_8] : memref<128x512xf32, #tpu.memory_space<vmem>>, vector<128x512xf32>
    %cst = arith.constant dense<0.000000e+00> : vector<8x512xf32>
    %9 = tpu.matmul %3, %8, %cst {dimension_numbers = #tpu.dot_dimension_numbers<[1], [0], [0], [1], [0, 0, 1, 1], [], []>} : vector<8x128xf32>, vector<128x512xf32>, vector<8x512xf32> -> vector<8x512xf32>
    %10 = arith.addf %7, %9 : vector<8x512xf32>
    %11 = vector.extract_strided_slice %10 {offsets = [0, 0], sizes = [8, 384], strides = [1, 1]} : vector<8x512xf32> to vector<8x384xf32>
    %12 = arith.negf %11 : vector<8x384xf32>
    %13 = math.exp %12 : vector<8x384xf32>
    %cst_9 = arith.constant 1.000000e+00 : f32
    %14 = vector.broadcast %cst_9 : f32 to vector<8x384xf32>
    %15 = arith.addf %14, %13 : vector<8x384xf32>
    %16 = arith.divf %14, %15 : vector<8x384xf32>
    %17 = vector.extract_strided_slice %10 {offsets = [0, 384], sizes = [8, 128], strides = [1, 1]} : vector<8x512xf32> to vector<8x128xf32>
    %18 = math.tanh %17 : vector<8x128xf32>
    %19 = vector.extract_strided_slice %16 {offsets = [0, 0], sizes = [8, 128], strides = [1, 1]} : vector<8x384xf32> to vector<8x128xf32>
    %20 = vector.extract_strided_slice %16 {offsets = [0, 128], sizes = [8, 128], strides = [1, 1]} : vector<8x384xf32> to vector<8x128xf32>
    %21 = vector.extract_strided_slice %16 {offsets = [0, 256], sizes = [8, 128], strides = [1, 1]} : vector<8x384xf32> to vector<8x128xf32>
    %22 = arith.mulf %4, %19 : vector<8x128xf32>
    %23 = arith.mulf %18, %20 : vector<8x128xf32>
    %24 = arith.addf %22, %23 : vector<8x128xf32>
    %25 = math.tanh %24 : vector<8x128xf32>
    %26 = arith.mulf %21, %25 : vector<8x128xf32>
    %27 = arith.index_cast %c0_i32_4 : i32 to index
    %c0_10 = arith.constant 0 : index
    %c0_11 = arith.constant 0 : index
    %28 = vector.load %arg6[%27, %c0_10, %c0_11] : memref<8x8x128xf32, #tpu.memory_space<vmem>>, vector<1x8x128xf32>
    %29 = vector.shape_cast %28 : vector<1x8x128xf32> to vector<8x128xf32>
    %30 = vector.shape_cast %26 : vector<8x128xf32> to vector<1x8x128xf32>
    tpu.vector_store %arg6[%27, %c0_10, %c0_11], %30 {strides = array<i32>} : memref<8x8x128xf32, #tpu.memory_space<vmem>>, vector<1x8x128xf32>,
    %c1_i32 = arith.constant 1 : i32
    %31 = arith.index_cast %c1_i32 : i32 to index
    %c0_12 = arith.constant 0 : index
    %c0_13 = arith.constant 0 : index
    %32 = vector.load %arg2[%31, %c0_12, %c0_13] : memref<8x8x512xf32, #tpu.memory_space<vmem>>, vector<1x8x512xf32>
    %33 = vector.shape_cast %32 : vector<1x8x512xf32> to vector<8x512xf32>
    %c0_14 = arith.constant 0 : index
    %c0_15 = arith.constant 0 : index
    %34 = vector.load %arg3[%c0_14, %c0_15] : memref<128x512xf32, #tpu.memory_space<vmem>>, vector<128x512xf32>
    %cst_16 = arith.constant dense<0.000000e+00> : vector<8x512xf32>
    %35 = tpu.matmul %26, %34, %cst_16 {dimension_numbers = #tpu.dot_dimension_numbers<[1], [0], [0], [1], [0, 0, 1, 1], [], []>} : vector<8x128xf32>, vector<128x512xf32>, vector<8x512xf32> -> vector<8x512xf32>
    %36 = arith.addf %33, %35 : vector<8x512xf32>
    %37 = vector.extract_strided_slice %36 {offsets = [0, 0], sizes = [8, 384], strides = [1, 1]} : vector<8x512xf32> to vector<8x384xf32>
    %38 = arith.negf %37 : vector<8x384xf32>
    %39 = math.exp %38 : vector<8x384xf32>
    %cst_17 = arith.constant 1.000000e+00 : f32
    %40 = vector.broadcast %cst_17 : f32 to vector<8x384xf32>
    %41 = arith.addf %40, %39 : vector<8x384xf32>
    %42 = arith.divf %40, %41 : vector<8x384xf32>
    %43 = vector.extract_strided_slice %36 {offsets = [0, 384], sizes = [8, 128], strides = [1, 1]} : vector<8x512xf32> to vector<8x128xf32>
    %44 = math.tanh %43 : vector<8x128xf32>
    %45 = vector.extract_strided_slice %42 {offsets = [0, 0], sizes = [8, 128], strides = [1, 1]} : vector<8x384xf32> to vector<8x128xf32>
    %46 = vector.extract_strided_slice %42 {offsets = [0, 128], sizes = [8, 128], strides = [1, 1]} : vector<8x384xf32> to vector<8x128xf32>
    %47 = vector.extract_strided_slice %42 {offsets = [0, 256], sizes = [8, 128], strides = [1, 1]} : vector<8x384xf32> to vector<8x128xf32>
    %48 = arith.mulf %24, %45 : vector<8x128xf32>
    %49 = arith.mulf %44, %46 : vector<8x128xf32>
    %50 = arith.addf %48, %49 : vector<8x128xf32>
    %51 = math.tanh %50 : vector<8x128xf32>
    %52 = arith.mulf %47, %51 : vector<8x128xf32>
    %53 = arith.index_cast %c1_i32 : i32 to index
    %c0_18 = arith.constant 0 : index
    %c0_19 = arith.constant 0 : index
    %54 = vector.load %arg6[%53, %c0_18, %c0_19] : memref<8x8x128xf32, #tpu.memory_space<vmem>>, vector<1x8x128xf32>
    %55 = vector.shape_cast %54 : vector<1x8x128xf32> to vector<8x128xf32>
    %56 = vector.shape_cast %52 : vector<8x128xf32> to vector<1x8x128xf32>
    tpu.vector_store %arg6[%53, %c0_18, %c0_19], %56 {strides = array<i32>} : memref<8x8x128xf32, #tpu.memory_space<vmem>>, vector<1x8x128xf32>,
    %c2_i32 = arith.constant 2 : i32
    %57 = arith.index_cast %c2_i32 : i32 to index
    %c0_20 = arith.constant 0 : index
    %c0_21 = arith.constant 0 : index
    %58 = vector.load %arg2[%57, %c0_20, %c0_21] : memref<8x8x512xf32, #tpu.memory_space<vmem>>, vector<1x8x512xf32>
    %59 = vector.shape_cast %58 : vector<1x8x512xf32> to vector<8x512xf32>
    %c0_22 = arith.constant 0 : index
    %c0_23 = arith.constant 0 : index
    %60 = vector.load %arg3[%c0_22, %c0_23] : memref<128x512xf32, #tpu.memory_space<vmem>>, vector<128x512xf32>
    %cst_24 = arith.constant dense<0.000000e+00> : vector<8x512xf32>
    %61 = tpu.matmul %52, %60, %cst_24 {dimension_numbers = #tpu.dot_dimension_numbers<[1], [0], [0], [1], [0, 0, 1, 1], [], []>} : vector<8x128xf32>, vector<128x512xf32>, vector<8x512xf32> -> vector<8x512xf32>
    %62 = arith.addf %59, %61 : vector<8x512xf32>
    %63 = vector.extract_strided_slice %62 {offsets = [0, 0], sizes = [8, 384], strides = [1, 1]} : vector<8x512xf32> to vector<8x384xf32>
    %64 = arith.negf %63 : vector<8x384xf32>
    %65 = math.exp %64 : vector<8x384xf32>
    %cst_25 = arith.constant 1.000000e+00 : f32
    %66 = vector.broadcast %cst_25 : f32 to vector<8x384xf32>
    %67 = arith.addf %66, %65 : vector<8x384xf32>
    %68 = arith.divf %66, %67 : vector<8x384xf32>
    %69 = vector.extract_strided_slice %62 {offsets = [0, 384], sizes = [8, 128], strides = [1, 1]} : vector<8x512xf32> to vector<8x128xf32>
    %70 = math.tanh %69 : vector<8x128xf32>
    %71 = vector.extract_strided_slice %68 {offsets = [0, 0], sizes = [8, 128], strides = [1, 1]} : vector<8x384xf32> to vector<8x128xf32>
    %72 = vector.extract_strided_slice %68 {offsets = [0, 128], sizes = [8, 128], strides = [1, 1]} : vector<8x384xf32> to vector<8x128xf32>
    %73 = vector.extract_strided_slice %68 {offsets = [0, 256], sizes = [8, 128], strides = [1, 1]} : vector<8x384xf32> to vector<8x128xf32>
    %74 = arith.mulf %50, %71 : vector<8x128xf32>
    %75 = arith.mulf %70, %72 : vector<8x128xf32>
    %76 = arith.addf %74, %75 : vector<8x128xf32>
    %77 = math.tanh %76 : vector<8x128xf32>
    %78 = arith.mulf %73, %77 : vector<8x128xf32>
    %79 = arith.index_cast %c2_i32 : i32 to index
    %c0_26 = arith.constant 0 : index
    %c0_27 = arith.constant 0 : index
    %80 = vector.load %arg6[%79, %c0_26, %c0_27] : memref<8x8x128xf32, #tpu.memory_space<vmem>>, vector<1x8x128xf32>
    %81 = vector.shape_cast %80 : vector<1x8x128xf32> to vector<8x128xf32>
    %82 = vector.shape_cast %78 : vector<8x128xf32> to vector<1x8x128xf32>
    tpu.vector_store %arg6[%79, %c0_26, %c0_27], %82 {strides = array<i32>} : memref<8x8x128xf32, #tpu.memory_space<vmem>>, vector<1x8x128xf32>,
    %c3_i32 = arith.constant 3 : i32
    %83 = arith.index_cast %c3_i32 : i32 to index
    %c0_28 = arith.constant 0 : index
    %c0_29 = arith.constant 0 : index
    %84 = vector.load %arg2[%83, %c0_28, %c0_29] : memref<8x8x512xf32, #tpu.memory_space<vmem>>, vector<1x8x512xf32>
    %85 = vector.shape_cast %84 : vector<1x8x512xf32> to vector<8x512xf32>
    %c0_30 = arith.constant 0 : index
    %c0_31 = arith.constant 0 : index
    %86 = vector.load %arg3[%c0_30, %c0_31] : memref<128x512xf32, #tpu.memory_space<vmem>>, vector<128x512xf32>
    %cst_32 = arith.constant dense<0.000000e+00> : vector<8x512xf32>
    %87 = tpu.matmul %78, %86, %cst_32 {dimension_numbers = #tpu.dot_dimension_numbers<[1], [0], [0], [1], [0, 0, 1, 1], [], []>} : vector<8x128xf32>, vector<128x512xf32>, vector<8x512xf32> -> vector<8x512xf32>
    %88 = arith.addf %85, %87 : vector<8x512xf32>
    %89 = vector.extract_strided_slice %88 {offsets = [0, 0], sizes = [8, 384], strides = [1, 1]} : vector<8x512xf32> to vector<8x384xf32>
    %90 = arith.negf %89 : vector<8x384xf32>
    %91 = math.exp %90 : vector<8x384xf32>
    %cst_33 = arith.constant 1.000000e+00 : f32
    %92 = vector.broadcast %cst_33 : f32 to vector<8x384xf32>
    %93 = arith.addf %92, %91 : vector<8x384xf32>
    %94 = arith.divf %92, %93 : vector<8x384xf32>
    %95 = vector.extract_strided_slice %88 {offsets = [0, 384], sizes = [8, 128], strides = [1, 1]} : vector<8x512xf32> to vector<8x128xf32>
    %96 = math.tanh %95 : vector<8x128xf32>
    %97 = vector.extract_strided_slice %94 {offsets = [0, 0], sizes = [8, 128], strides = [1, 1]} : vector<8x384xf32> to vector<8x128xf32>
    %98 = vector.extract_strided_slice %94 {offsets = [0, 128], sizes = [8, 128], strides = [1, 1]} : vector<8x384xf32> to vector<8x128xf32>
    %99 = vector.extract_strided_slice %94 {offsets = [0, 256], sizes = [8, 128], strides = [1, 1]} : vector<8x384xf32> to vector<8x128xf32>
    %100 = arith.mulf %76, %97 : vector<8x128xf32>
    %101 = arith.mulf %96, %98 : vector<8x128xf32>
    %102 = arith.addf %100, %101 : vector<8x128xf32>
    %103 = math.tanh %102 : vector<8x128xf32>
    %104 = arith.mulf %99, %103 : vector<8x128xf32>
    %105 = arith.index_cast %c3_i32 : i32 to index
    %c0_34 = arith.constant 0 : index
    %c0_35 = arith.constant 0 : index
    %106 = vector.load %arg6[%105, %c0_34, %c0_35] : memref<8x8x128xf32, #tpu.memory_space<vmem>>, vector<1x8x128xf32>
    %107 = vector.shape_cast %106 : vector<1x8x128xf32> to vector<8x128xf32>
    %108 = vector.shape_cast %104 : vector<8x128xf32> to vector<1x8x128xf32>
    tpu.vector_store %arg6[%105, %c0_34, %c0_35], %108 {strides = array<i32>} : memref<8x8x128xf32, #tpu.memory_space<vmem>>, vector<1x8x128xf32>,
    %c4_i32 = arith.constant 4 : i32
    %109 = arith.index_cast %c4_i32 : i32 to index
    %c0_36 = arith.constant 0 : index
    %c0_37 = arith.constant 0 : index
    %110 = vector.load %arg2[%109, %c0_36, %c0_37] : memref<8x8x512xf32, #tpu.memory_space<vmem>>, vector<1x8x512xf32>
    %111 = vector.shape_cast %110 : vector<1x8x512xf32> to vector<8x512xf32>
    %c0_38 = arith.constant 0 : index
    %c0_39 = arith.constant 0 : index
    %112 = vector.load %arg3[%c0_38, %c0_39] : memref<128x512xf32, #tpu.memory_space<vmem>>, vector<128x512xf32>
    %cst_40 = arith.constant dense<0.000000e+00> : vector<8x512xf32>
    %113 = tpu.matmul %104, %112, %cst_40 {dimension_numbers = #tpu.dot_dimension_numbers<[1], [0], [0], [1], [0, 0, 1, 1], [], []>} : vector<8x128xf32>, vector<128x512xf32>, vector<8x512xf32> -> vector<8x512xf32>
    %114 = arith.addf %111, %113 : vector<8x512xf32>
    %115 = vector.extract_strided_slice %114 {offsets = [0, 0], sizes = [8, 384], strides = [1, 1]} : vector<8x512xf32> to vector<8x384xf32>
    %116 = arith.negf %115 : vector<8x384xf32>
    %117 = math.exp %116 : vector<8x384xf32>
    %cst_41 = arith.constant 1.000000e+00 : f32
    %118 = vector.broadcast %cst_41 : f32 to vector<8x384xf32>
    %119 = arith.addf %118, %117 : vector<8x384xf32>
    %120 = arith.divf %118, %119 : vector<8x384xf32>
    %121 = vector.extract_strided_slice %114 {offsets = [0, 384], sizes = [8, 128], strides = [1, 1]} : vector<8x512xf32> to vector<8x128xf32>
    %122 = math.tanh %121 : vector<8x128xf32>
    %123 = vector.extract_strided_slice %120 {offsets = [0, 0], sizes = [8, 128], strides = [1, 1]} : vector<8x384xf32> to vector<8x128xf32>
    %124 = vector.extract_strided_slice %120 {offsets = [0, 128], sizes = [8, 128], strides = [1, 1]} : vector<8x384xf32> to vector<8x128xf32>
    %125 = vector.extract_strided_slice %120 {offsets = [0, 256], sizes = [8, 128], strides = [1, 1]} : vector<8x384xf32> to vector<8x128xf32>
    %126 = arith.mulf %102, %123 : vector<8x128xf32>
    %127 = arith.mulf %122, %124 : vector<8x128xf32>
    %128 = arith.addf %126, %127 : vector<8x128xf32>
    %129 = math.tanh %128 : vector<8x128xf32>
    %130 = arith.mulf %125, %129 : vector<8x128xf32>
    %131 = arith.index_cast %c4_i32 : i32 to index
    %c0_42 = arith.constant 0 : index
    %c0_43 = arith.constant 0 : index
    %132 = vector.load %arg6[%131, %c0_42, %c0_43] : memref<8x8x128xf32, #tpu.memory_space<vmem>>, vector<1x8x128xf32>
    %133 = vector.shape_cast %132 : vector<1x8x128xf32> to vector<8x128xf32>
    %134 = vector.shape_cast %130 : vector<8x128xf32> to vector<1x8x128xf32>
    tpu.vector_store %arg6[%131, %c0_42, %c0_43], %134 {strides = array<i32>} : memref<8x8x128xf32, #tpu.memory_space<vmem>>, vector<1x8x128xf32>,
    %c5_i32 = arith.constant 5 : i32
    %135 = arith.index_cast %c5_i32 : i32 to index
    %c0_44 = arith.constant 0 : index
    %c0_45 = arith.constant 0 : index
    %136 = vector.load %arg2[%135, %c0_44, %c0_45] : memref<8x8x512xf32, #tpu.memory_space<vmem>>, vector<1x8x512xf32>
    %137 = vector.shape_cast %136 : vector<1x8x512xf32> to vector<8x512xf32>
    %c0_46 = arith.constant 0 : index
    %c0_47 = arith.constant 0 : index
    %138 = vector.load %arg3[%c0_46, %c0_47] : memref<128x512xf32, #tpu.memory_space<vmem>>, vector<128x512xf32>
    %cst_48 = arith.constant dense<0.000000e+00> : vector<8x512xf32>
    %139 = tpu.matmul %130, %138, %cst_48 {dimension_numbers = #tpu.dot_dimension_numbers<[1], [0], [0], [1], [0, 0, 1, 1], [], []>} : vector<8x128xf32>, vector<128x512xf32>, vector<8x512xf32> -> vector<8x512xf32>
    %140 = arith.addf %137, %139 : vector<8x512xf32>
    %141 = vector.extract_strided_slice %140 {offsets = [0, 0], sizes = [8, 384], strides = [1, 1]} : vector<8x512xf32> to vector<8x384xf32>
    %142 = arith.negf %141 : vector<8x384xf32>
    %143 = math.exp %142 : vector<8x384xf32>
    %cst_49 = arith.constant 1.000000e+00 : f32
    %144 = vector.broadcast %cst_49 : f32 to vector<8x384xf32>
    %145 = arith.addf %144, %143 : vector<8x384xf32>
    %146 = arith.divf %144, %145 : vector<8x384xf32>
    %147 = vector.extract_strided_slice %140 {offsets = [0, 384], sizes = [8, 128], strides = [1, 1]} : vector<8x512xf32> to vector<8x128xf32>
    %148 = math.tanh %147 : vector<8x128xf32>
    %149 = vector.extract_strided_slice %146 {offsets = [0, 0], sizes = [8, 128], strides = [1, 1]} : vector<8x384xf32> to vector<8x128xf32>
    %150 = vector.extract_strided_slice %146 {offsets = [0, 128], sizes = [8, 128], strides = [1, 1]} : vector<8x384xf32> to vector<8x128xf32>
    %151 = vector.extract_strided_slice %146 {offsets = [0, 256], sizes = [8, 128], strides = [1, 1]} : vector<8x384xf32> to vector<8x128xf32>
    %152 = arith.mulf %128, %149 : vector<8x128xf32>
    %153 = arith.mulf %148, %150 : vector<8x128xf32>
    %154 = arith.addf %152, %153 : vector<8x128xf32>
    %155 = math.tanh %154 : vector<8x128xf32>
    %156 = arith.mulf %151, %155 : vector<8x128xf32>
    %157 = arith.index_cast %c5_i32 : i32 to index
    %c0_50 = arith.constant 0 : index
    %c0_51 = arith.constant 0 : index
    %158 = vector.load %arg6[%157, %c0_50, %c0_51] : memref<8x8x128xf32, #tpu.memory_space<vmem>>, vector<1x8x128xf32>
    %159 = vector.shape_cast %158 : vector<1x8x128xf32> to vector<8x128xf32>
    %160 = vector.shape_cast %156 : vector<8x128xf32> to vector<1x8x128xf32>
    tpu.vector_store %arg6[%157, %c0_50, %c0_51], %160 {strides = array<i32>} : memref<8x8x128xf32, #tpu.memory_space<vmem>>, vector<1x8x128xf32>,
    %c6_i32 = arith.constant 6 : i32
    %161 = arith.index_cast %c6_i32 : i32 to index
    %c0_52 = arith.constant 0 : index
    %c0_53 = arith.constant 0 : index
    %162 = vector.load %arg2[%161, %c0_52, %c0_53] : memref<8x8x512xf32, #tpu.memory_space<vmem>>, vector<1x8x512xf32>
    %163 = vector.shape_cast %162 : vector<1x8x512xf32> to vector<8x512xf32>
    %c0_54 = arith.constant 0 : index
    %c0_55 = arith.constant 0 : index
    %164 = vector.load %arg3[%c0_54, %c0_55] : memref<128x512xf32, #tpu.memory_space<vmem>>, vector<128x512xf32>
    %cst_56 = arith.constant dense<0.000000e+00> : vector<8x512xf32>
    %165 = tpu.matmul %156, %164, %cst_56 {dimension_numbers = #tpu.dot_dimension_numbers<[1], [0], [0], [1], [0, 0, 1, 1], [], []>} : vector<8x128xf32>, vector<128x512xf32>, vector<8x512xf32> -> vector<8x512xf32>
    %166 = arith.addf %163, %165 : vector<8x512xf32>
    %167 = vector.extract_strided_slice %166 {offsets = [0, 0], sizes = [8, 384], strides = [1, 1]} : vector<8x512xf32> to vector<8x384xf32>
    %168 = arith.negf %167 : vector<8x384xf32>
    %169 = math.exp %168 : vector<8x384xf32>
    %cst_57 = arith.constant 1.000000e+00 : f32
    %170 = vector.broadcast %cst_57 : f32 to vector<8x384xf32>
    %171 = arith.addf %170, %169 : vector<8x384xf32>
    %172 = arith.divf %170, %171 : vector<8x384xf32>
    %173 = vector.extract_strided_slice %166 {offsets = [0, 384], sizes = [8, 128], strides = [1, 1]} : vector<8x512xf32> to vector<8x128xf32>
    %174 = math.tanh %173 : vector<8x128xf32>
    %175 = vector.extract_strided_slice %172 {offsets = [0, 0], sizes = [8, 128], strides = [1, 1]} : vector<8x384xf32> to vector<8x128xf32>
    %176 = vector.extract_strided_slice %172 {offsets = [0, 128], sizes = [8, 128], strides = [1, 1]} : vector<8x384xf32> to vector<8x128xf32>
    %177 = vector.extract_strided_slice %172 {offsets = [0, 256], sizes = [8, 128], strides = [1, 1]} : vector<8x384xf32> to vector<8x128xf32>
    %178 = arith.mulf %154, %175 : vector<8x128xf32>
    %179 = arith.mulf %174, %176 : vector<8x128xf32>
    %180 = arith.addf %178, %179 : vector<8x128xf32>
    %181 = math.tanh %180 : vector<8x128xf32>
    %182 = arith.mulf %177, %181 : vector<8x128xf32>
    %183 = arith.index_cast %c6_i32 : i32 to index
    %c0_58 = arith.constant 0 : index
    %c0_59 = arith.constant 0 : index
    %184 = vector.load %arg6[%183, %c0_58, %c0_59] : memref<8x8x128xf32, #tpu.memory_space<vmem>>, vector<1x8x128xf32>
    %185 = vector.shape_cast %184 : vector<1x8x128xf32> to vector<8x128xf32>
    %186 = vector.shape_cast %182 : vector<8x128xf32> to vector<1x8x128xf32>
    tpu.vector_store %arg6[%183, %c0_58, %c0_59], %186 {strides = array<i32>} : memref<8x8x128xf32, #tpu.memory_space<vmem>>, vector<1x8x128xf32>,
    %c7_i32 = arith.constant 7 : i32
    %187 = arith.index_cast %c7_i32 : i32 to index
    %c0_60 = arith.constant 0 : index
    %c0_61 = arith.constant 0 : index
    %188 = vector.load %arg2[%187, %c0_60, %c0_61] : memref<8x8x512xf32, #tpu.memory_space<vmem>>, vector<1x8x512xf32>
    %189 = vector.shape_cast %188 : vector<1x8x512xf32> to vector<8x512xf32>
    %c0_62 = arith.constant 0 : index
    %c0_63 = arith.constant 0 : index
    %190 = vector.load %arg3[%c0_62, %c0_63] : memref<128x512xf32, #tpu.memory_space<vmem>>, vector<128x512xf32>
    %cst_64 = arith.constant dense<0.000000e+00> : vector<8x512xf32>
    %191 = tpu.matmul %182, %190, %cst_64 {dimension_numbers = #tpu.dot_dimension_numbers<[1], [0], [0], [1], [0, 0, 1, 1], [], []>} : vector<8x128xf32>, vector<128x512xf32>, vector<8x512xf32> -> vector<8x512xf32>
    %192 = arith.addf %189, %191 : vector<8x512xf32>
    %193 = vector.extract_strided_slice %192 {offsets = [0, 0], sizes = [8, 384], strides = [1, 1]} : vector<8x512xf32> to vector<8x384xf32>
    %194 = arith.negf %193 : vector<8x384xf32>
    %195 = math.exp %194 : vector<8x384xf32>
    %cst_65 = arith.constant 1.000000e+00 : f32
    %196 = vector.broadcast %cst_65 : f32 to vector<8x384xf32>
    %197 = arith.addf %196, %195 : vector<8x384xf32>
    %198 = arith.divf %196, %197 : vector<8x384xf32>
    %199 = vector.extract_strided_slice %192 {offsets = [0, 384], sizes = [8, 128], strides = [1, 1]} : vector<8x512xf32> to vector<8x128xf32>
    %200 = math.tanh %199 : vector<8x128xf32>
    %201 = vector.extract_strided_slice %198 {offsets = [0, 0], sizes = [8, 128], strides = [1, 1]} : vector<8x384xf32> to vector<8x128xf32>
    %202 = vector.extract_strided_slice %198 {offsets = [0, 128], sizes = [8, 128], strides = [1, 1]} : vector<8x384xf32> to vector<8x128xf32>
    %203 = vector.extract_strided_slice %198 {offsets = [0, 256], sizes = [8, 128], strides = [1, 1]} : vector<8x384xf32> to vector<8x128xf32>
    %204 = arith.mulf %180, %201 : vector<8x128xf32>
    %205 = arith.mulf %200, %202 : vector<8x128xf32>
    %206 = arith.addf %204, %205 : vector<8x128xf32>
    %207 = math.tanh %206 : vector<8x128xf32>
    %208 = arith.mulf %203, %207 : vector<8x128xf32>
    %209 = arith.index_cast %c7_i32 : i32 to index
    %c0_66 = arith.constant 0 : index
    %c0_67 = arith.constant 0 : index
    %210 = vector.load %arg6[%209, %c0_66, %c0_67] : memref<8x8x128xf32, #tpu.memory_space<vmem>>, vector<1x8x128xf32>
    %211 = vector.shape_cast %210 : vector<1x8x128xf32> to vector<8x128xf32>
    %212 = vector.shape_cast %208 : vector<8x128xf32> to vector<1x8x128xf32>
    tpu.vector_store %arg6[%209, %c0_66, %c0_67], %212 {strides = array<i32>} : memref<8x8x128xf32, #tpu.memory_space<vmem>>, vector<1x8x128xf32>,
    %c8_i32 = arith.constant 8 : i32
    %c0_68 = arith.constant 0 : index
    %c0_69 = arith.constant 0 : index
    %213 = vector.load %arg8[%c0_68, %c0_69] : memref<8x128xf32, #tpu.memory_space<vmem>>, vector<8x128xf32>
    tpu.vector_store %arg8[%c0_68, %c0_69], %208 {strides = array<i32>} : memref<8x128xf32, #tpu.memory_space<vmem>>, vector<8x128xf32>,
    %c0_70 = arith.constant 0 : index
    %c0_71 = arith.constant 0 : index
    %214 = vector.load %arg9[%c0_70, %c0_71] : memref<8x128xf32, #tpu.memory_space<vmem>>, vector<8x128xf32>
    tpu.vector_store %arg9[%c0_70, %c0_71], %206 {strides = array<i32>} : memref<8x128xf32, #tpu.memory_space<vmem>>, vector<8x128xf32>,
    %c0_i32_72 = arith.constant 0 : i32
    %215 = arith.cmpi eq, %arg1, %c0_i32_72 : i32
    %216 = arith.extui %215 : i1 to i32
    %c0_i32_73 = arith.constant 0 : i32
    %217 = arith.cmpi ne, %216, %c0_i32_73 : i32
    scf.if %217 {
      %c0_74 = arith.constant 0 : index
      %c0_75 = arith.constant 0 : index
      %218 = vector.load %arg7[%c0_74, %c0_75] : memref<8x128xf32, #tpu.memory_space<vmem>>, vector<8x128xf32>
      tpu.vector_store %arg7[%c0_74, %c0_75], %206 {strides = array<i32>} : memref<8x128xf32, #tpu.memory_space<vmem>>, vector<8x128xf32>,
    } else {
    }
    return
  }
  func.func @transform_0(%arg0: i32, %arg1: i32) -> (i32, i32, i32) {
    %c0_i32 = arith.constant 0 : i32
    %c0_i32_0 = arith.constant 0 : i32
    return %arg1, %arg0, %c0_i32 : i32, i32, i32
  }
  func.func @transform_1(%arg0: i32, %arg1: i32) -> (i32, i32) {
    %c0_i32 = arith.constant 0 : i32
    %c0_i32_0 = arith.constant 0 : i32
    %c0_i32_1 = arith.constant 0 : i32
    return %c0_i32, %c0_i32_0 : i32, i32
  }
  func.func @transform_2(%arg0: i32, %arg1: i32) -> (i32, i32) {
    %c0_i32 = arith.constant 0 : i32
    %c0_i32_0 = arith.constant 0 : i32
    return %arg0, %c0_i32 : i32, i32
  }
  func.func @transform_3(%arg0: i32, %arg1: i32) -> (i32, i32) {
    %c0_i32 = arith.constant 0 : i32
    %c0_i32_0 = arith.constant 0 : i32
    return %arg0, %c0_i32 : i32, i32
  }
  func.func @transform_4(%arg0: i32, %arg1: i32) -> (i32, i32, i32) {
    %c0_i32 = arith.constant 0 : i32
    %c0_i32_0 = arith.constant 0 : i32
    return %arg1, %arg0, %c0_i32 : i32, i32, i32
  }
  func.func @transform_5(%arg0: i32, %arg1: i32) -> (i32, i32) {
    %c0_i32 = arith.constant 0 : i32
    %c0_i32_0 = arith.constant 0 : i32
    return %arg0, %c0_i32 : i32, i32
  }
}

</mosaic_0001>

<llo_original>
// kernel: tpu_custom_call.1
$region0: #{tpu_custom_call.1}
  #allocation0 [shape = 'u32[]', space=smem, size = 0x4, offset = 0x4, fixed_abs, tag = 'smem constant byte address 0x4 - core index']
  #allocation1 [shape = 'u32[144,128]{1,0:T(1,128)}', space=vmem, size = 0x12000, scoped, tag = 'internal scratch']
  #allocation2 [shape = 'f32[8,128]{1,0:T(8,128)}', space=vmem, size = 0x1000, scoped, tag = 'scratch operand']
  #allocation3 [shape = 'f32[8,128]{1,0:T(8,128)}', space=vmem, size = 0x1000, scoped, tag = 'scratch operand']
  %s0 = inlined_call_operand.hbm [shape: f32[8,8,512], index: 0, kind: input, shape index: {}]
  %s1 = inlined_call_operand.hbm [shape: f32[128,512], index: 1, kind: input, shape index: {}]
  %s2 = inlined_call_operand.hbm [shape: f32[8,128], index: 2, kind: input, shape index: {}]
  %s3 = inlined_call_operand.vmem [shape: f32[8,128], index: 3, kind: input, shape index: {}]
  %s4 = inlined_call_operand.hbm [shape: f32[8,8,128], index: 4, kind: output, shape index: {0}]
  %s5 = inlined_call_operand.hbm [shape: f32[8,128], index: 5, kind: output, shape index: {1}]
  %6 = xla_tuple %s4, %s5
  %s7 = sld [smem:[#allocation0]]
  $region54: #{tpu_custom_call.1} parent=0
    _
  %s9 = ssub.s32 1, %s7
  %s10 = scalar_select 0, %s9, %s7
  $region1: #{tpu_custom_call.1} parent=0
    #allocation4 [shape = 'u8[131072]{0}', space=vmem, size = 0x20000, scoped, tag = 'input window, operand 0, single buffered']
    #allocation5 [shape = 's32[1]{0}', space=sflag, size = 0x4, scoped, tag = 'scoped memory for tpu_custom_call.1']
    #allocation6 [shape = 's32[1]{0}', space=sflag, size = 0x4, scoped, tag = 'scoped memory for tpu_custom_call.1']
    #allocation7 [shape = 'u8[262144]{0}', space=vmem, size = 0x40000, scoped, tag = 'input window, operand 1, single buffered']
    #allocation8 [shape = 's32[1]{0}', space=sflag, size = 0x4, scoped, tag = 'scoped memory for tpu_custom_call.1']
    #allocation9 [shape = 'u8[4096]{0}', space=vmem, size = 0x1000, scoped, tag = 'input window, operand 2, single buffered']
    #allocation10 [shape = 'u8[32768]{0}', space=vmem, size = 0x8000, scoped, tag = 'output window, operand 0, single buffered']
    #allocation11 [shape = 'u8[4096]{0}', space=vmem, size = 0x1000, scoped, tag = 'output window, operand 1, single buffered']
    #allocation12 [shape = 's32[1]{0}', space=sflag, size = 0x4, scoped, tag = 'scoped memory for tpu_custom_call.1']
    %11 = vsyncpa [#allocation5], 0
    %12 = vsyncpa [#allocation8], 0
    %13 = vsyncpa [#allocation6], 0
    %14 = vsyncpa [#allocation12], 0
    // Predicated region
    $region2: #{tpu_custom_call.1} parent=1 // pred_check
      _
    $region3: #{tpu_custom_call.1} parent=1 // pred_check_branch
      %16 = sbr.rel (0) target = $region5
    $region4: #{tpu_custom_call.1} parent=1 // pred_region
      %s18 = ssub.s32 4096, 4096
      %19 = vsyncadd [#allocation5], %s18
      %s20 = sshll.u32 [#allocation4], 4
      %s21 = int_to_ptr.vmem [resolvable:$true] %s20
      %26 = dma.hbm_to_vmem [thread:$0]  %s0, 4096, %s21, [#allocation5], 512, 512, 32
    $region5: #{tpu_custom_call.1} parent=1 // pred_fallthru
      _
    // Predicated region
    $region6: #{tpu_custom_call.1} parent=1 // pred_check
      _
    $region7: #{tpu_custom_call.1} parent=1 // pred_check_branch
      %28 = sbr.rel (0) target = $region9
    $region8: #{tpu_custom_call.1} parent=1 // pred_region
      %s30 = ssub.s32 8192, 8192
      %31 = vsyncadd [#allocation8], %s30
      %s32 = sshll.u32 [#allocation7], 4
      %s33 = int_to_ptr.vmem [resolvable:$true] %s32
      %38 = dma.hbm_to_vmem [thread:$0]  %s1, 8192, %s33, [#allocation8], 512, 512, 32
    $region9: #{tpu_custom_call.1} parent=1 // pred_fallthru
      _
    // Predicated region
    $region10: #{tpu_custom_call.1} parent=1 // pred_check
      _
    $region11: #{tpu_custom_call.1} parent=1 // pred_check_branch
      %40 = sbr.rel (0) target = $region13
    $region12: #{tpu_custom_call.1} parent=1 // pred_region
      %s42 = ssub.s32 128, 128
      %43 = vsyncadd [#allocation8], %s42
      %s45 = sshll.u32 [#allocation9], 4
      %s46 = int_to_ptr.vmem [resolvable:$true] %s45
      %48 = dma.hbm_to_vmem [thread:$0]  %s2, 128, %s46, [#allocation8]
    $region13: #{tpu_custom_call.1} parent=1 // pred_fallthru
      _
    // Predicated region
    $region14: #{tpu_custom_call.1} parent=1 // pred_check
      _
    $region15: #{tpu_custom_call.1} parent=1 // pred_check_branch
      %50 = sbr.rel (0) target = $region17
    $region16: #{tpu_custom_call.1} parent=1 // pred_region
      _
    $region17: #{tpu_custom_call.1} parent=1 // pred_fallthru
      _
    // Predicated region
    $region18: #{tpu_custom_call.1} parent=1 // pred_check
      _
    $region19: #{tpu_custom_call.1} parent=1 // pred_check_branch
      %52 = sbr.rel (0) target = $region21
    $region20: #{tpu_custom_call.1} parent=1 // pred_region
      %53 = dma.done [#allocation5], 4096
    $region21: #{tpu_custom_call.1} parent=1 // pred_fallthru
      _
    // Predicated region
    $region22: #{tpu_custom_call.1} parent=1 // pred_check
      _
    $region23: #{tpu_custom_call.1} parent=1 // pred_check_branch
      %55 = sbr.rel (0) target = $region25
    $region24: #{tpu_custom_call.1} parent=1 // pred_region
      %56 = dma.done [#allocation8], 8192
    $region25: #{tpu_custom_call.1} parent=1 // pred_fallthru
      _
    // Predicated region
    $region26: #{tpu_custom_call.1} parent=1 // pred_check
      _
    $region27: #{tpu_custom_call.1} parent=1 // pred_check_branch
      %58 = sbr.rel (0) target = $region29
    $region28: #{tpu_custom_call.1} parent=1 // pred_region
      %59 = dma.done [#allocation8], 128
    $region29: #{tpu_custom_call.1} parent=1 // pred_fallthru
      _
    %p60 = scmp.eq.s32.totalorder 0, 0
    // Predicated region
    $region30: #{tpu_custom_call.1} parent=1 // pred_check
      %p61 = pneg %p60
    $region31: #{tpu_custom_call.1} parent=1 // pred_check_branch
      %63 = sbr.rel (%p61) target = $region33
    $region32: #{tpu_custom_call.1} parent=1 // pred_region
      %v64 = vld [vmem:[#allocation9] sm:$0xff]
      %65 = vst [vmem:[#allocation2] sm:$0xff] %v64
      %v66 = vld [vmem:[%s3] sm:$0xff]
      %67 = vst [vmem:[#allocation3] sm:$0xff] %v66
    $region33: #{tpu_custom_call.1} parent=1 // pred_fallthru
      _
    %v68 = vld [vmem:[#allocation2] sm:$0xff]
    %v69 = vld [vmem:[#allocation3] sm:$0xff]
    %v70 = vld [vmem:[#allocation4] sm:$0xff]
    %v71 = vld [vmem:[#allocation4 + $0x8] sm:$0xff]
    %v72 = vld [vmem:[#allocation4 + $0x10] sm:$0xff]
    %v73 = vld [vmem:[#allocation4 + $0x18] sm:$0xff]
    %v74 = vld [vmem:[#allocation7] sm:$0xff]
    %v75 = vld [vmem:[#allocation7 + $0x8] sm:$0xff]
    %v76 = vld [vmem:[#allocation7 + $0x10] sm:$0xff]
    %v77 = vld [vmem:[#allocation7 + $0x18] sm:$0xff]
    %v78 = vld [vmem:[#allocation7 + $0x20] sm:$0xff]
    %v79 = vld [vmem:[#allocation7 + $0x28] sm:$0xff]
    %v80 = vld [vmem:[#allocation7 + $0x30] sm:$0xff]
    %v81 = vld [vmem:[#allocation7 + $0x38] sm:$0xff]
    %v82 = vld [vmem:[#allocation7 + $0x40] sm:$0xff]
    %v83 = vld [vmem:[#allocation7 + $0x48] sm:$0xff]
    %v84 = vld [vmem:[#allocation7 + $0x50] sm:$0xff]
    %v85 = vld [vmem:[#allocation7 + $0x58] sm:$0xff]
    %v86 = vld [vmem:[#allocation7 + $0x60] sm:$0xff]
    %v87 = vld [vmem:[#allocation7 + $0x68] sm:$0xff]
    %v88 = vld [vmem:[#allocation7 + $0x70] sm:$0xff]
    %v89 = vld [vmem:[#allocation7 + $0x78] sm:$0xff]
    %v90 = vld [vmem:[#allocation7 + $0x80] sm:$0xff]
    %v91 = vld [vmem:[#allocation7 + $0x88] sm:$0xff]
    %v92 = vld [vmem:[#allocation7 + $0x90] sm:$0xff]
    %v93 = vld [vmem:[#allocation7 + $0x98] sm:$0xff]
    %v94 = vld [vmem:[#allocation7 + $0xa0] sm:$0xff]
    %v95 = vld [vmem:[#allocation7 + $0xa8] sm:$0xff]
    %v96 = vld [vmem:[#allocation7 + $0xb0] sm:$0xff]
    %v97 = vld [vmem:[#allocation7 + $0xb8] sm:$0xff]
    %v98 = vld [vmem:[#allocation7 + $0xc0] sm:$0xff]
    %v99 = vld [vmem:[#allocation7 + $0xc8] sm:$0xff]
    %v100 = vld [vmem:[#allocation7 + $0xd0] sm:$0xff]
    %v101 = vld [vmem:[#allocation7 + $0xd8] sm:$0xff]
    %v102 = vld [vmem:[#allocation7 + $0xe0] sm:$0xff]
    %v103 = vld [vmem:[#allocation7 + $0xe8] sm:$0xff]
    %v104 = vld [vmem:[#allocation7 + $0xf0] sm:$0xff]
    %v105 = vld [vmem:[#allocation7 + $0xf8] sm:$0xff]
    %v106 = vld [vmem:[#allocation7 + $0x100] sm:$0xff]
    %v107 = vld [vmem:[#allocation7 + $0x108] sm:$0xff]
    %v108 = vld [vmem:[#allocation7 + $0x110] sm:$0xff]
    %v109 = vld [vmem:[#allocation7 + $0x118] sm:$0xff]
    %v110 = vld [vmem:[#allocation7 + $0x120] sm:$0xff]
    %v111 = vld [vmem:[#allocation7 + $0x128] sm:$0xff]
    %v112 = vld [vmem:[#allocation7 + $0x130] sm:$0xff]
    %v113 = vld [vmem:[#allocation7 + $0x138] sm:$0xff]
    %v114 = vld [vmem:[#allocation7 + $0x140] sm:$0xff]
    %v115 = vld [vmem:[#allocation7 + $0x148] sm:$0xff]
    %v116 = vld [vmem:[#allocation7 + $0x150] sm:$0xff]
    %v117 = vld [vmem:[#allocation7 + $0x158] sm:$0xff]
    %v118 = vld [vmem:[#allocation7 + $0x160] sm:$0xff]
    %v119 = vld [vmem:[#allocation7 + $0x168] sm:$0xff]
    %v120 = vld [vmem:[#allocation7 + $0x170] sm:$0xff]
    %v121 = vld [vmem:[#allocation7 + $0x178] sm:$0xff]
    %v122 = vld [vmem:[#allocation7 + $0x180] sm:$0xff]
    %v123 = vld [vmem:[#allocation7 + $0x188] sm:$0xff]
    %v124 = vld [vmem:[#allocation7 + $0x190] sm:$0xff]
    %v125 = vld [vmem:[#allocation7 + $0x198] sm:$0xff]
    %v126 = vld [vmem:[#allocation7 + $0x1a0] sm:$0xff]
    %v127 = vld [vmem:[#allocation7 + $0x1a8] sm:$0xff]
    %v128 = vld [vmem:[#allocation7 + $0x1b0] sm:$0xff]
    %v129 = vld [vmem:[#allocation7 + $0x1b8] sm:$0xff]
    %v130 = vld [vmem:[#allocation7 + $0x1c0] sm:$0xff]
    %v131 = vld [vmem:[#allocation7 + $0x1c8] sm:$0xff]
    %v132 = vld [vmem:[#allocation7 + $0x1d0] sm:$0xff]
    %v133 = vld [vmem:[#allocation7 + $0x1d8] sm:$0xff]
    %v134 = vld [vmem:[#allocation7 + $0x1e0] sm:$0xff]
    %v135 = vld [vmem:[#allocation7 + $0x1e8] sm:$0xff]
    %v136 = vld [vmem:[#allocation7 + $0x1f0] sm:$0xff]
    %v137 = vld [vmem:[#allocation7 + $0x1f8] sm:$0xff]
    %138 = vmatprep.subr.mxu0 %v75
    %139 = vmatpush1.msra.mxu0 %v74
    %140 = vmatprep.subr.mxu0 %v79
    %141 = vmatpush1.msra.mxu0 %v78
    %142 = vmatprep.subr.mxu0 %v83
    %143 = vmatpush1.msra.mxu0 %v82
    %144 = vmatprep.subr.mxu0 %v87
    %145 = vmatpush1.msra.mxu0 %v86
    %146 = vmatprep.subr.mxu0 %v91
    %147 = vmatpush1.msra.mxu0 %v90
    %148 = vmatprep.subr.mxu0 %v95
    %149 = vmatpush1.msra.mxu0 %v94
    %150 = vmatprep.subr.mxu0 %v99
    %151 = vmatpush1.msra.mxu0 %v98
    %152 = vmatprep.subr.mxu0 %v103
    %153 = vmatpush1.msra.mxu0 %v102
    %154 = vmatprep.subr.mxu0 %v107
    %155 = vmatpush1.msra.mxu0 %v106
    %156 = vmatprep.subr.mxu0 %v111
    %157 = vmatpush1.msra.mxu0 %v110
    %158 = vmatprep.subr.mxu0 %v115
    %159 = vmatpush1.msra.mxu0 %v114
    %160 = vmatprep.subr.mxu0 %v119
    %161 = vmatpush1.msra.mxu0 %v118
    %162 = vmatprep.subr.mxu0 %v123
    %163 = vmatpush1.msra.mxu0 %v122
    %164 = vmatprep.subr.mxu0 %v127
    %165 = vmatpush1.msra.mxu0 %v126
    %166 = vmatprep.subr.mxu0 %v131
    %167 = vmatpush1.msra.mxu0 %v130
    %168 = vmatprep.subr.mxu0 %v135
    %169 = vmatpush1.msra.mxu0 %v134
    %170 = vmatprep.subr.mxu0 0.0
    %171 = vmatpush1.msra.mxu0 0.0
    %172 = vmatprep.subr.mxu0 0.0
    %173 = vmatpush1.msra.mxu0 0.0
    %174 = vmatprep.subr.mxu0 0.0
    %175 = vmatpush1.msra.mxu0 0.0
    %176 = vmatprep.subr.mxu0 0.0
    %177 = vmatpush1.msra.mxu0 0.0
    %178 = vmatprep.subr.mxu0 0.0
    %179 = vmatpush1.msra.mxu0 0.0
    %180 = vmatprep.subr.mxu0 0.0
    %181 = vmatpush1.msra.mxu0 0.0
    %182 = vmatprep.subr.mxu0 0.0
    %183 = vmatpush1.msra.mxu0 0.0
    %184 = vmatprep.subr.mxu0 0.0
    %185 = vmatpush1.msra.mxu0 0.0
    %186 = vmatprep.subr.mxu0 0.0
    %187 = vmatpush1.msra.mxu0 0.0
    %188 = vmatprep.subr.mxu0 0.0
    %189 = vmatpush1.msra.mxu0 0.0
    %190 = vmatprep.subr.mxu0 0.0
    %191 = vmatpush1.msra.mxu0 0.0
    %192 = vmatprep.subr.mxu0 0.0
    %193 = vmatpush1.msra.mxu0 0.0
    %194 = vmatprep.subr.mxu0 0.0
    %195 = vmatpush1.msra.mxu0 0.0
    %196 = vmatprep.subr.mxu0 0.0
    %197 = vmatpush1.msra.mxu0 0.0
    %198 = vmatprep.subr.mxu0 0.0
    %199 = vmatpush1.msra.mxu0 0.0
    %200 = vmatprep.subr.mxu0 0.0
    %201 = vmatpush1.msra.mxu0 0.0
    %202 = vmatprep.mubr.f32.mxu0 0.0
    %203 = vmatmul.mubr.f32.gmra.mrb[0].mxu0 %v68
    %v204 = vpop.f32.mrb[0].mxu0
    %v205 = vadd.f32 0.0, %v204
    %v206 = vpop.f32.mrb[0].mxu0
    %v207 = vadd.f32 0.0, %v206
    %208 = vdwg.mxu0
    %209 = vmatprep.subr.mxu0 %v77
    %210 = vmatpush1.msra.mxu0 %v76
    %211 = vmatprep.subr.mxu0 %v81
    %212 = vmatpush1.msra.mxu0 %v80
    %213 = vmatprep.subr.mxu0 %v85
    %214 = vmatpush1.msra.mxu0 %v84
    %215 = vmatprep.subr.mxu0 %v89
    %216 = vmatpush1.msra.mxu0 %v88
    %217 = vmatprep.subr.mxu0 %v93
    %218 = vmatpush1.msra.mxu0 %v92
    %219 = vmatprep.subr.mxu0 %v97
    %220 = vmatpush1.msra.mxu0 %v96
    %221 = vmatprep.subr.mxu0 %v101
    %222 = vmatpush1.msra.mxu0 %v100
    %223 = vmatprep.subr.mxu0 %v105
    %224 = vmatpush1.msra.mxu0 %v104
    %225 = vmatprep.subr.mxu0 %v109
    %226 = vmatpush1.msra.mxu0 %v108
    %227 = vmatprep.subr.mxu0 %v113
    %228 = vmatpush1.msra.mxu0 %v112
    %229 = vmatprep.subr.mxu0 %v117
    %230 = vmatpush1.msra.mxu0 %v116
    %231 = vmatprep.subr.mxu0 %v121
    %232 = vmatpush1.msra.mxu0 %v120
    %233 = vmatprep.subr.mxu0 %v125
    %234 = vmatpush1.msra.mxu0 %v124
    %235 = vmatprep.subr.mxu0 %v129
    %236 = vmatpush1.msra.mxu0 %v128
    %237 = vmatprep.subr.mxu0 %v133
    %238 = vmatpush1.msra.mxu0 %v132
    %239 = vmatprep.subr.mxu0 %v137
    %240 = vmatpush1.msra.mxu0 %v136
    %241 = vmatprep.subr.mxu0 0.0
    %242 = vmatpush1.msra.mxu0 0.0
    %243 = vmatprep.subr.mxu0 0.0
    %244 = vmatpush1.msra.mxu0 0.0
    %245 = vmatprep.subr.mxu0 0.0
    %246 = vmatpush1.msra.mxu0 0.0
    %247 = vmatprep.subr.mxu0 0.0
    %248 = vmatpush1.msra.mxu0 0.0
    %249 = vmatprep.subr.mxu0 0.0
    %250 = vmatpush1.msra.mxu0 0.0
    %251 = vmatprep.subr.mxu0 0.0
    %252 = vmatpush1.msra.mxu0 0.0
    %253 = vmatprep.subr.mxu0 0.0
    %254 = vmatpush1.msra.mxu0 0.0
    %255 = vmatprep.subr.mxu0 0.0
    %256 = vmatpush1.msra.mxu0 0.0
    %257 = vmatprep.subr.mxu0 0.0
    %258 = vmatpush1.msra.mxu0 0.0
    %259 = vmatprep.subr.mxu0 0.0
    %260 = vmatpush1.msra.mxu0 0.0
    %261 = vmatprep.subr.mxu0 0.0
    %262 = vmatpush1.msra.mxu0 0.0
    %263 = vmatprep.subr.mxu0 0.0
    %264 = vmatpush1.msra.mxu0 0.0
    %265 = vmatprep.subr.mxu0 0.0
    %266 = vmatpush1.msra.mxu0 0.0
    %267 = vmatprep.subr.mxu0 0.0
    %268 = vmatpush1.msra.mxu0 0.0
    %269 = vmatprep.subr.mxu0 0.0
    %270 = vmatpush1.msra.mxu0 0.0
    %271 = vmatprep.subr.mxu0 0.0
    %272 = vmatpush1.msra.mxu0 0.0
    %273 = vmatprep.mubr.f32.mxu0 0.0
    %274 = vmatmul.mubr.f32.gmra.mrb[0].mxu0 %v68
    %v275 = vpop.f32.mrb[0].mxu0
    %v276 = vadd.f32 0.0, %v275
    %v277 = vpop.f32.mrb[0].mxu0
    %v278 = vadd.f32 0.0, %v277
    %279 = vdwg.mxu0
    %v280 = vadd.f32 %v70, %v205
    %v281 = vadd.f32 %v71, %v207
    %v282 = vadd.f32 %v72, %v276
    %v283 = vadd.f32 %v73, %v278
    %v284 = vxor.u32 %v280, 2147483648
    %v285 = vxor.u32 %v281, 2147483648
    %v286 = vxor.u32 %v282, 2147483648
    %v287 = vmul.f32 %v284, 1.442695
    %v288 = vpow.pop %v287
    %v289 = vmul.f32 %v285, 1.442695
    %v290 = vpow.pop %v289
    %v291 = vmul.f32 %v286, 1.442695
    %v292 = vpow.pop %v291
    %v293 = vadd.f32 %v288, 1.0
    %v294 = vadd.f32 %v290, 1.0
    %v295 = vadd.f32 %v292, 1.0
    %v296 = vrcp.pop %v293
    %v297 = vmul.f32 1.0, %v296
    %v298 = vrcp.pop %v294
    %v299 = vmul.f32 1.0, %v298
    %v300 = vrcp.pop %v295
    %v301 = vmul.f32 1.0, %v300
    %v302 = vtanh.pop %v283
    %v303 = vmul.f32 %v69, %v297
    %v304 = vmul.f32 %v302, %v299
    %v305 = vadd.f32 %v303, %v304
    %v306 = vtanh.pop %v305
    %v307 = vmul.f32 %v301, %v306
    %308 = vst [vmem:[#allocation10] sm:$0xff] %v307
    %s309 = scalar_lea.vmem [#allocation4], 32
    %v310 = vld [vmem:[%s309] sm:$0xff]
    %v311 = vld [vmem:[%s309 + $0x8] sm:$0xff]
    %v312 = vld [vmem:[%s309 + $0x10] sm:$0xff]
    %v313 = vld [vmem:[%s309 + $0x18] sm:$0xff]
    %v314 = vld [vmem:[#allocation7] sm:$0xff]
    %v315 = vld [vmem:[#allocation7 + $0x8] sm:$0xff]
    %v316 = vld [vmem:[#allocation7 + $0x10] sm:$0xff]
    %v317 = vld [vmem:[#allocation7 + $0x18] sm:$0xff]
    %v318 = vld [vmem:[#allocation7 + $0x20] sm:$0xff]
    %v319 = vld [vmem:[#allocation7 + $0x28] sm:$0xff]
    %v320 = vld [vmem:[#allocation7 + $0x30] sm:$0xff]
    %v321 = vld [vmem:[#allocation7 + $0x38] sm:$0xff]
    %v322 = vld [vmem:[#allocation7 + $0x40] sm:$0xff]
    %v323 = vld [vmem:[#allocation7 + $0x48] sm:$0xff]
    %v324 = vld [vmem:[#allocation7 + $0x50] sm:$0xff]
    %v325 = vld [vmem:[#allocation7 + $0x58] sm:$0xff]
    %v326 = vld [vmem:[#allocation7 + $0x60] sm:$0xff]
    %v327 = vld [vmem:[#allocation7 + $0x68] sm:$0xff]
    %v328 = vld [vmem:[#allocation7 + $0x70] sm:$0xff]
    %v329 = vld [vmem:[#allocation7 + $0x78] sm:$0xff]
    %v330 = vld [vmem:[#allocation7 + $0x80] sm:$0xff]
    %v331 = vld [vmem:[#allocation7 + $0x88] sm:$0xff]
    %v332 = vld [vmem:[#allocation7 + $0x90] sm:$0xff]
    %v333 = vld [vmem:[#allocation7 + $0x98] sm:$0xff]
    %v334 = vld [vmem:[#allocation7 + $0xa0] sm:$0xff]
    %v335 = vld [vmem:[#allocation7 + $0xa8] sm:$0xff]
    %v336 = vld [vmem:[#allocation7 + $0xb0] sm:$0xff]
    %v337 = vld [vmem:[#allocation7 + $0xb8] sm:$0xff]
    %v338 = vld [vmem:[#allocation7 + $0xc0] sm:$0xff]
    %v339 = vld [vmem:[#allocation7 + $0xc8] sm:$0xff]
    %v340 = vld [vmem:[#allocation7 + $0xd0] sm:$0xff]
    %v341 = vld [vmem:[#allocation7 + $0xd8] sm:$0xff]
    %v342 = vld [vmem:[#allocation7 + $0xe0] sm:$0xff]
    %v343 = vld [vmem:[#allocation7 + $0xe8] sm:$0xff]
    %v344 = vld [vmem:[#allocation7 + $0xf0] sm:$0xff]
    %v345 = vld [vmem:[#allocation7 + $0xf8] sm:$0xff]
    %v346 = vld [vmem:[#allocation7 + $0x100] sm:$0xff]
    %v347 = vld [vmem:[#allocation7 + $0x108] sm:$0xff]
    %v348 = vld [vmem:[#allocation7 + $0x110] sm:$0xff]
    %v349 = vld [vmem:[#allocation7 + $0x118] sm:$0xff]
    %v350 = vld [vmem:[#allocation7 + $0x120] sm:$0xff]
    %v351 = vld [vmem:[#allocation7 + $0x128] sm:$0xff]
    %v352 = vld [vmem:[#allocation7 + $0x130] sm:$0xff]
    %v353 = vld [vmem:[#allocation7 + $0x138] sm:$0xff]
    %v354 = vld [vmem:[#allocation7 + $0x140] sm:$0xff]
    %v355 = vld [vmem:[#allocation7 + $0x148] sm:$0xff]
    %v356 = vld [vmem:[#allocation7 + $0x150] sm:$0xff]
    %v357 = vld [vmem:[#allocation7 + $0x158] sm:$0xff]
    %v358 = vld [vmem:[#allocation7 + $0x160] sm:$0xff]
    %v359 = vld [vmem:[#allocation7 + $0x168] sm:$0xff]
    %v360 = vld [vmem:[#allocation7 + $0x170] sm:$0xff]
    %v361 = vld [vmem:[#allocation7 + $0x178] sm:$0xff]
    %v362 = vld [vmem:[#allocation7 + $0x180] sm:$0xff]
    %v363 = vld [vmem:[#allocation7 + $0x188] sm:$0xff]
    %v364 = vld [vmem:[#allocation7 + $0x190] sm:$0xff]
    %v365 = vld [vmem:[#allocation7 + $0x198] sm:$0xff]
    %v366 = vld [vmem:[#allocation7 + $0x1a0] sm:$0xff]
    %v367 = vld [vmem:[#allocation7 + $0x1a8] sm:$0xff]
    %v368 = vld [vmem:[#allocation7 + $0x1b0] sm:$0xff]
    %v369 = vld [vmem:[#allocation7 + $0x1b8] sm:$0xff]
    %v370 = vld [vmem:[#allocation7 + $0x1c0] sm:$0xff]
    %v371 = vld [vmem:[#allocation7 + $0x1c8] sm:$0xff]
    %v372 = vld [vmem:[#allocation7 + $0x1d0] sm:$0xff]
    %v373 = vld [vmem:[#allocation7 + $0x1d8] sm:$0xff]
    %v374 = vld [vmem:[#allocation7 + $0x1e0] sm:$0xff]
    %v375 = vld [vmem:[#allocation7 + $0x1e8] sm:$0xff]
    %v376 = vld [vmem:[#allocation7 + $0x1f0] sm:$0xff]
    %v377 = vld [vmem:[#allocation7 + $0x1f8] sm:$0xff]
    %378 = vmatprep.subr.mxu0 %v315
    %379 = vmatpush1.msra.mxu0 %v314
    %380 = vmatprep.subr.mxu0 %v319
    %381 = vmatpush1.msra.mxu0 %v318
    %382 = vmatprep.subr.mxu0 %v323
    %383 = vmatpush1.msra.mxu0 %v322
    %384 = vmatprep.subr.mxu0 %v327
    %385 = vmatpush1.msra.mxu0 %v326
    %386 = vmatprep.subr.mxu0 %v331
    %387 = vmatpush1.msra.mxu0 %v330
    %388 = vmatprep.subr.mxu0 %v335
    %389 = vmatpush1.msra.mxu0 %v334
    %390 = vmatprep.subr.mxu0 %v339
    %391 = vmatpush1.msra.mxu0 %v338
    %392 = vmatprep.subr.mxu0 %v343
    %393 = vmatpush1.msra.mxu0 %v342
    %394 = vmatprep.subr.mxu0 %v347
    %395 = vmatpush1.msra.mxu0 %v346
    %396 = vmatprep.subr.mxu0 %v351
    %397 = vmatpush1.msra.mxu0 %v350
    %398 = vmatprep.subr.mxu0 %v355
    %399 = vmatpush1.msra.mxu0 %v354
    %400 = vmatprep.subr.mxu0 %v359
    %401 = vmatpush1.msra.mxu0 %v358
    %402 = vmatprep.subr.mxu0 %v363
    %403 = vmatpush1.msra.mxu0 %v362
    %404 = vmatprep.subr.mxu0 %v367
    %405 = vmatpush1.msra.mxu0 %v366
    %406 = vmatprep.subr.mxu0 %v371
    %407 = vmatpush1.msra.mxu0 %v370
    %408 = vmatprep.subr.mxu0 %v375
    %409 = vmatpush1.msra.mxu0 %v374
    %410 = vmatprep.subr.mxu0 0.0
    %411 = vmatpush1.msra.mxu0 0.0
    %412 = vmatprep.subr.mxu0 0.0
    %413 = vmatpush1.msra.mxu0 0.0
    %414 = vmatprep.subr.mxu0 0.0
    %415 = vmatpush1.msra.mxu0 0.0
    %416 = vmatprep.subr.mxu0 0.0
    %417 = vmatpush1.msra.mxu0 0.0
    %418 = vmatprep.subr.mxu0 0.0
    %419 = vmatpush1.msra.mxu0 0.0
    %420 = vmatprep.subr.mxu0 0.0
    %421 = vmatpush1.msra.mxu0 0.0
    %422 = vmatprep.subr.mxu0 0.0
    %423 = vmatpush1.msra.mxu0 0.0
    %424 = vmatprep.subr.mxu0 0.0
    %425 = vmatpush1.msra.mxu0 0.0
    %426 = vmatprep.subr.mxu0 0.0
    %427 = vmatpush1.msra.mxu0 0.0
    %428 = vmatprep.subr.mxu0 0.0
    %429 = vmatpush1.msra.mxu0 0.0
    %430 = vmatprep.subr.mxu0 0.0
    %431 = vmatpush1.msra.mxu0 0.0
    %432 = vmatprep.subr.mxu0 0.0
    %433 = vmatpush1.msra.mxu0 0.0
    %434 = vmatprep.subr.mxu0 0.0
    %435 = vmatpush1.msra.mxu0 0.0
    %436 = vmatprep.subr.mxu0 0.0
    %437 = vmatpush1.msra.mxu0 0.0
    %438 = vmatprep.subr.mxu0 0.0
    %439 = vmatpush1.msra.mxu0 0.0
    %440 = vmatprep.subr.mxu0 0.0
    %441 = vmatpush1.msra.mxu0 0.0
    %442 = vmatprep.mubr.f32.mxu0 0.0
    %443 = vmatmul.mubr.f32.gmra.mrb[0].mxu0 %v307
    %v444 = vpop.f32.mrb[0].mxu0
    %v445 = vadd.f32 0.0, %v444
    %v446 = vpop.f32.mrb[0].mxu0
    %v447 = vadd.f32 0.0, %v446
    %448 = vdwg.mxu0
    %449 = vmatprep.subr.mxu0 %v317
    %450 = vmatpush1.msra.mxu0 %v316
    %451 = vmatprep.subr.mxu0 %v321
    %452 = vmatpush1.msra.mxu0 %v320
    %453 = vmatprep.subr.mxu0 %v325
    %454 = vmatpush1.msra.mxu0 %v324
    %455 = vmatprep.subr.mxu0 %v329
    %456 = vmatpush1.msra.mxu0 %v328
    %457 = vmatprep.subr.mxu0 %v333
    %458 = vmatpush1.msra.mxu0 %v332
    %459 = vmatprep.subr.mxu0 %v337
    %460 = vmatpush1.msra.mxu0 %v336
    %461 = vmatprep.subr.mxu0 %v341
    %462 = vmatpush1.msra.mxu0 %v340
    %463 = vmatprep.subr.mxu0 %v345
    %464 = vmatpush1.msra.mxu0 %v344
    %465 = vmatprep.subr.mxu0 %v349
    %466 = vmatpush1.msra.mxu0 %v348
    %467 = vmatprep.subr.mxu0 %v353
    %468 = vmatpush1.msra.mxu0 %v352
    %469 = vmatprep.subr.mxu0 %v357
    %470 = vmatpush1.msra.mxu0 %v356
    %471 = vmatprep.subr.mxu0 %v361
    %472 = vmatpush1.msra.mxu0 %v360
    %473 = vmatprep.subr.mxu0 %v365
    %474 = vmatpush1.msra.mxu0 %v364
    %475 = vmatprep.subr.mxu0 %v369
    %476 = vmatpush1.msra.mxu0 %v368
    %477 = vmatprep.subr.mxu0 %v373
    %478 = vmatpush1.msra.mxu0 %v372
    %479 = vmatprep.subr.mxu0 %v377
    %480 = vmatpush1.msra.mxu0 %v376
    %481 = vmatprep.subr.mxu0 0.0
    %482 = vmatpush1.msra.mxu0 0.0
    %483 = vmatprep.subr.mxu0 0.0
    %484 = vmatpush1.msra.mxu0 0.0
    %485 = vmatprep.subr.mxu0 0.0
    %486 = vmatpush1.msra.mxu0 0.0
    %487 = vmatprep.subr.mxu0 0.0
    %488 = vmatpush1.msra.mxu0 0.0
    %489 = vmatprep.subr.mxu0 0.0
    %490 = vmatpush1.msra.mxu0 0.0
    %491 = vmatprep.subr.mxu0 0.0
    %492 = vmatpush1.msra.mxu0 0.0
    %493 = vmatprep.subr.mxu0 0.0
    %494 = vmatpush1.msra.mxu0 0.0
    %495 = vmatprep.subr.mxu0 0.0
    %496 = vmatpush1.msra.mxu0 0.0
    %497 = vmatprep.subr.mxu0 0.0
    %498 = vmatpush1.msra.mxu0 0.0
    %499 = vmatprep.subr.mxu0 0.0
    %500 = vmatpush1.msra.mxu0 0.0
    %501 = vmatprep.subr.mxu0 0.0
    %502 = vmatpush1.msra.mxu0 0.0
    %503 = vmatprep.subr.mxu0 0.0
    %504 = vmatpush1.msra.mxu0 0.0
    %505 = vmatprep.subr.mxu0 0.0
    %506 = vmatpush1.msra.mxu0 0.0
    %507 = vmatprep.subr.mxu0 0.0
    %508 = vmatpush1.msra.mxu0 0.0
    %509 = vmatprep.subr.mxu0 0.0
    %510 = vmatpush1.msra.mxu0 0.0
    %511 = vmatprep.subr.mxu0 0.0
    %512 = vmatpush1.msra.mxu0 0.0
    %513 = vmatprep.mubr.f32.mxu0 0.0
    %514 = vmatmul.mubr.f32.gmra.mrb[0].mxu0 %v307
    %v515 = vpop.f32.mrb[0].mxu0
    %v516 = vadd.f32 0.0, %v515
    %v517 = vpop.f32.mrb[0].mxu0
    %v518 = vadd.f32 0.0, %v517
    %519 = vdwg.mxu0
    %v520 = vadd.f32 %v310, %v445
    %v521 = vadd.f32 %v311, %v447
    %v522 = vadd.f32 %v312, %v516
    %v523 = vadd.f32 %v313, %v518
    %v524 = vxor.u32 %v520, 2147483648
    %v525 = vxor.u32 %v521, 2147483648
    %v526 = vxor.u32 %v522, 2147483648
    %v527 = vmul.f32 %v524, 1.442695
    %v528 = vpow.pop %v527
    %v529 = vmul.f32 %v525, 1.442695
    %v530 = vpow.pop %v529
    %v531 = vmul.f32 %v526, 1.442695
    %v532 = vpow.pop %v531
    %v533 = vadd.f32 %v528, 1.0
    %v534 = vadd.f32 %v530, 1.0
    %v535 = vadd.f32 %v532, 1.0
    %v536 = vrcp.pop %v533
    %v537 = vmul.f32 1.0, %v536
    %v538 = vrcp.pop %v534
    %v539 = vmul.f32 1.0, %v538
    %v540 = vrcp.pop %v535
    %v541 = vmul.f32 1.0, %v540
    %v542 = vtanh.pop %v523
    %v543 = vmul.f32 %v305, %v537
    %v544 = vmul.f32 %v542, %v539
    %v545 = vadd.f32 %v543, %v544
    %v546 = vtanh.pop %v545
    %v547 = vmul.f32 %v541, %v546
    %s548 = scalar_lea.vmem [#allocation10], 8
    %549 = vst [vmem:[%s548] sm:$0xff] %v547
    %s550 = scalar_lea.vmem [#allocation4], 64
    %v551 = vld [vmem:[%s550] sm:$0xff]
    %v552 = vld [vmem:[%s550 + $0x8] sm:$0xff]
    %v553 = vld [vmem:[%s550 + $0x10] sm:$0xff]
    %v554 = vld [vmem:[%s550 + $0x18] sm:$0xff]
    %v555 = vld [vmem:[#allocation7] sm:$0xff]
    %v556 = vld [vmem:[#allocation7 + $0x8] sm:$0xff]
    %v557 = vld [vmem:[#allocation7 + $0x10] sm:$0xff]
    %v558 = vld [vmem:[#allocation7 + $0x18] sm:$0xff]
    %v559 = vld [vmem:[#allocation7 + $0x20] sm:$0xff]
    %v560 = vld [vmem:[#allocation7 + $0x28] sm:$0xff]
    %v561 = vld [vmem:[#allocation7 + $0x30] sm:$0xff]
    %v562 = vld [vmem:[#allocation7 + $0x38] sm:$0xff]
    %v563 = vld [vmem:[#allocation7 + $0x40] sm:$0xff]
    %v564 = vld [vmem:[#allocation7 + $0x48] sm:$0xff]
    %v565 = vld [vmem:[#allocation7 + $0x50] sm:$0xff]
    %v566 = vld [vmem:[#allocation7 + $0x58] sm:$0xff]
    %v567 = vld [vmem:[#allocation7 + $0x60] sm:$0xff]
    %v568 = vld [vmem:[#allocation7 + $0x68] sm:$0xff]
    %v569 = vld [vmem:[#allocation7 + $0x70] sm:$0xff]
    %v570 = vld [vmem:[#allocation7 + $0x78] sm:$0xff]
    %v571 = vld [vmem:[#allocation7 + $0x80] sm:$0xff]
    %v572 = vld [vmem:[#allocation7 + $0x88] sm:$0xff]
    %v573 = vld [vmem:[#allocation7 + $0x90] sm:$0xff]
    %v574 = vld [vmem:[#allocation7 + $0x98] sm:$0xff]
    %v575 = vld [vmem:[#allocation7 + $0xa0] sm:$0xff]
    %v576 = vld [vmem:[#allocation7 + $0xa8] sm:$0xff]
    %v577 = vld [vmem:[#allocation7 + $0xb0] sm:$0xff]
    %v578 = vld [vmem:[#allocation7 + $0xb8] sm:$0xff]
    %v579 = vld [vmem:[#allocation7 + $0xc0] sm:$0xff]
    %v580 = vld [vmem:[#allocation7 + $0xc8] sm:$0xff]
    %v581 = vld [vmem:[#allocation7 + $0xd0] sm:$0xff]
    %v582 = vld [vmem:[#allocation7 + $0xd8] sm:$0xff]
    %v583 = vld [vmem:[#allocation7 + $0xe0] sm:$0xff]
    %v584 = vld [vmem:[#allocation7 + $0xe8] sm:$0xff]
    %v585 = vld [vmem:[#allocation7 + $0xf0] sm:$0xff]
    %v586 = vld [vmem:[#allocation7 + $0xf8] sm:$0xff]
    %v587 = vld [vmem:[#allocation7 + $0x100] sm:$0xff]
    %v588 = vld [vmem:[#allocation7 + $0x108] sm:$0xff]
    %v589 = vld [vmem:[#allocation7 + $0x110] sm:$0xff]
    %v590 = vld [vmem:[#allocation7 + $0x118] sm:$0xff]
    %v591 = vld [vmem:[#allocation7 + $0x120] sm:$0xff]
    %v592 = vld [vmem:[#allocation7 + $0x128] sm:$0xff]
    %v593 = vld [vmem:[#allocation7 + $0x130] sm:$0xff]
    %v594 = vld [vmem:[#allocation7 + $0x138] sm:$0xff]
    %v595 = vld [vmem:[#allocation7 + $0x140] sm:$0xff]
    %v596 = vld [vmem:[#allocation7 + $0x148] sm:$0xff]
    %v597 = vld [vmem:[#allocation7 + $0x150] sm:$0xff]
    %v598 = vld [vmem:[#allocation7 + $0x158] sm:$0xff]
    %v599 = vld [vmem:[#allocation7 + $0x160] sm:$0xff]
    %v600 = vld [vmem:[#allocation7 + $0x168] sm:$0xff]
    %v601 = vld [vmem:[#allocation7 + $0x170] sm:$0xff]
    %v602 = vld [vmem:[#allocation7 + $0x178] sm:$0xff]
    %v603 = vld [vmem:[#allocation7 + $0x180] sm:$0xff]
    %v604 = vld [vmem:[#allocation7 + $0x188] sm:$0xff]
    %v605 = vld [vmem:[#allocation7 + $0x190] sm:$0xff]
    %v606 = vld [vmem:[#allocation7 + $0x198] sm:$0xff]
    %v607 = vld [vmem:[#allocation7 + $0x1a0] sm:$0xff]
    %v608 = vld [vmem:[#allocation7 + $0x1a8] sm:$0xff]
    %v609 = vld [vmem:[#allocation7 + $0x1b0] sm:$0xff]
    %v610 = vld [vmem:[#allocation7 + $0x1b8] sm:$0xff]
    %v611 = vld [vmem:[#allocation7 + $0x1c0] sm:$0xff]
    %v612 = vld [vmem:[#allocation7 + $0x1c8] sm:$0xff]
    %v613 = vld [vmem:[#allocation7 + $0x1d0] sm:$0xff]
    %v614 = vld [vmem:[#allocation7 + $0x1d8] sm:$0xff]
    %v615 = vld [vmem:[#allocation7 + $0x1e0] sm:$0xff]
    %v616 = vld [vmem:[#allocation7 + $0x1e8] sm:$0xff]
    %v617 = vld [vmem:[#allocation7 + $0x1f0] sm:$0xff]
    %v618 = vld [vmem:[#allocation7 + $0x1f8] sm:$0xff]
    %619 = vmatprep.subr.mxu0 %v556
    %620 = vmatpush1.msra.mxu0 %v555
    %621 = vmatprep.subr.mxu0 %v560
    %622 = vmatpush1.msra.mxu0 %v559
    %623 = vmatprep.subr.mxu0 %v564
    %624 = vmatpush1.msra.mxu0 %v563
    %625 = vmatprep.subr.mxu0 %v568
    %626 = vmatpush1.msra.mxu0 %v567
    %627 = vmatprep.subr.mxu0 %v572
    %628 = vmatpush1.msra.mxu0 %v571
    %629 = vmatprep.subr.mxu0 %v576
    %630 = vmatpush1.msra.mxu0 %v575
    %631 = vmatprep.subr.mxu0 %v580
    %632 = vmatpush1.msra.mxu0 %v579
    %633 = vmatprep.subr.mxu0 %v584
    %634 = vmatpush1.msra.mxu0 %v583
    %635 = vmatprep.subr.mxu0 %v588
    %636 = vmatpush1.msra.mxu0 %v587
    %637 = vmatprep.subr.mxu0 %v592
    %638 = vmatpush1.msra.mxu0 %v591
    %639 = vmatprep.subr.mxu0 %v596
    %640 = vmatpush1.msra.mxu0 %v595
    %641 = vmatprep.subr.mxu0 %v600
    %642 = vmatpush1.msra.mxu0 %v599
    %643 = vmatprep.subr.mxu0 %v604
    %644 = vmatpush1.msra.mxu0 %v603
    %645 = vmatprep.subr.mxu0 %v608
    %646 = vmatpush1.msra.mxu0 %v607
    %647 = vmatprep.subr.mxu0 %v612
    %648 = vmatpush1.msra.mxu0 %v611
    %649 = vmatprep.subr.mxu0 %v616
    %650 = vmatpush1.msra.mxu0 %v615
    %651 = vmatprep.subr.mxu0 0.0
    %652 = vmatpush1.msra.mxu0 0.0
    %653 = vmatprep.subr.mxu0 0.0
    %654 = vmatpush1.msra.mxu0 0.0
    %655 = vmatprep.subr.mxu0 0.0
    %656 = vmatpush1.msra.mxu0 0.0
    %657 = vmatprep.subr.mxu0 0.0
    %658 = vmatpush1.msra.mxu0 0.0
    %659 = vmatprep.subr.mxu0 0.0
    %660 = vmatpush1.msra.mxu0 0.0
    %661 = vmatprep.subr.mxu0 0.0
    %662 = vmatpush1.msra.mxu0 0.0
    %663 = vmatprep.subr.mxu0 0.0
    %664 = vmatpush1.msra.mxu0 0.0
    %665 = vmatprep.subr.mxu0 0.0
    %666 = vmatpush1.msra.mxu0 0.0
    %667 = vmatprep.subr.mxu0 0.0
    %668 = vmatpush1.msra.mxu0 0.0
    %669 = vmatprep.subr.mxu0 0.0
    %670 = vmatpush1.msra.mxu0 0.0
    %671 = vmatprep.subr.mxu0 0.0
    %672 = vmatpush1.msra.mxu0 0.0
    %673 = vmatprep.subr.mxu0 0.0
    %674 = vmatpush1.msra.mxu0 0.0
    %675 = vmatprep.subr.mxu0 0.0
    %676 = vmatpush1.msra.mxu0 0.0
    %677 = vmatprep.subr.mxu0 0.0
    %678 = vmatpush1.msra.mxu0 0.0
    %679 = vmatprep.subr.mxu0 0.0
    %680 = vmatpush1.msra.mxu0 0.0
    %681 = vmatprep.subr.mxu0 0.0
    %682 = vmatpush1.msra.mxu0 0.0
    %683 = vmatprep.mubr.f32.mxu0 0.0
    %684 = vmatmul.mubr.f32.gmra.mrb[0].mxu0 %v547
    %v685 = vpop.f32.mrb[0].mxu0
    %v686 = vadd.f32 0.0, %v685
    %v687 = vpop.f32.mrb[0].mxu0
    %v688 = vadd.f32 0.0, %v687
    %689 = vdwg.mxu0
    %690 = vmatprep.subr.mxu0 %v558
    %691 = vmatpush1.msra.mxu0 %v557
    %692 = vmatprep.subr.mxu0 %v562
    %693 = vmatpush1.msra.mxu0 %v561
    %694 = vmatprep.subr.mxu0 %v566
    %695 = vmatpush1.msra.mxu0 %v565
    %696 = vmatprep.subr.mxu0 %v570
    %697 = vmatpush1.msra.mxu0 %v569
    %698 = vmatprep.subr.mxu0 %v574
    %699 = vmatpush1.msra.mxu0 %v573
    %700 = vmatprep.subr.mxu0 %v578
    %701 = vmatpush1.msra.mxu0 %v577
    %702 = vmatprep.subr.mxu0 %v582
    %703 = vmatpush1.msra.mxu0 %v581
    %704 = vmatprep.subr.mxu0 %v586
    %705 = vmatpush1.msra.mxu0 %v585
    %706 = vmatprep.subr.mxu0 %v590
    %707 = vmatpush1.msra.mxu0 %v589
    %708 = vmatprep.subr.mxu0 %v594
    %709 = vmatpush1.msra.mxu0 %v593
    %710 = vmatprep.subr.mxu0 %v598
    %711 = vmatpush1.msra.mxu0 %v597
    %712 = vmatprep.subr.mxu0 %v602
    %713 = vmatpush1.msra.mxu0 %v601
    %714 = vmatprep.subr.mxu0 %v606
    %715 = vmatpush1.msra.mxu0 %v605
    %716 = vmatprep.subr.mxu0 %v610
    %717 = vmatpush1.msra.mxu0 %v609
    %718 = vmatprep.subr.mxu0 %v614
    %719 = vmatpush1.msra.mxu0 %v613
    %720 = vmatprep.subr.mxu0 %v618
    %721 = vmatpush1.msra.mxu0 %v617
    %722 = vmatprep.subr.mxu0 0.0
    %723 = vmatpush1.msra.mxu0 0.0
    %724 = vmatprep.subr.mxu0 0.0
    %725 = vmatpush1.msra.mxu0 0.0
    %726 = vmatprep.subr.mxu0 0.0
    %727 = vmatpush1.msra.mxu0 0.0
    %728 = vmatprep.subr.mxu0 0.0
    %729 = vmatpush1.msra.mxu0 0.0
    %730 = vmatprep.subr.mxu0 0.0
    %731 = vmatpush1.msra.mxu0 0.0
    %732 = vmatprep.subr.mxu0 0.0
    %733 = vmatpush1.msra.mxu0 0.0
    %734 = vmatprep.subr.mxu0 0.0
    %735 = vmatpush1.msra.mxu0 0.0
    %736 = vmatprep.subr.mxu0 0.0
    %737 = vmatpush1.msra.mxu0 0.0
    %738 = vmatprep.subr.mxu0 0.0
    %739 = vmatpush1.msra.mxu0 0.0
    %740 = vmatprep.subr.mxu0 0.0
    %741 = vmatpush1.msra.mxu0 0.0
    %742 = vmatprep.subr.mxu0 0.0
    %743 = vmatpush1.msra.mxu0 0.0
    %744 = vmatprep.subr.mxu0 0.0
    %745 = vmatpush1.msra.mxu0 0.0
    %746 = vmatprep.subr.mxu0 0.0
    %747 = vmatpush1.msra.mxu0 0.0
    %748 = vmatprep.subr.mxu0 0.0
    %749 = vmatpush1.msra.mxu0 0.0
    %750 = vmatprep.subr.mxu0 0.0
    %751 = vmatpush1.msra.mxu0 0.0
    %752 = vmatprep.subr.mxu0 0.0
    %753 = vmatpush1.msra.mxu0 0.0
    %754 = vmatprep.mubr.f32.mxu0 0.0
    %755 = vmatmul.mubr.f32.gmra.mrb[0].mxu0 %v547
    %v756 = vpop.f32.mrb[0].mxu0
    %v757 = vadd.f32 0.0, %v756
    %v758 = vpop.f32.mrb[0].mxu0
    %v759 = vadd.f32 0.0, %v758
    %760 = vdwg.mxu0
    %v761 = vadd.f32 %v551, %v686
    %v762 = vadd.f32 %v552, %v688
    %v763 = vadd.f32 %v553, %v757
    %v764 = vadd.f32 %v554, %v759
    %v765 = vxor.u32 %v761, 2147483648
    %v766 = vxor.u32 %v762, 2147483648
    %v767 = vxor.u32 %v763, 2147483648
    %v768 = vmul.f32 %v765, 1.442695
    %v769 = vpow.pop %v768
    %v770 = vmul.f32 %v766, 1.442695
    %v771 = vpow.pop %v770
    %v772 = vmul.f32 %v767, 1.442695
    %v773 = vpow.pop %v772
    %v774 = vadd.f32 %v769, 1.0
    %v775 = vadd.f32 %v771, 1.0
    %v776 = vadd.f32 %v773, 1.0
    %v777 = vrcp.pop %v774
    %v778 = vmul.f32 1.0, %v777
    %v779 = vrcp.pop %v775
    %v780 = vmul.f32 1.0, %v779
    %v781 = vrcp.pop %v776
    %v782 = vmul.f32 1.0, %v781
    %v783 = vtanh.pop %v764
    %v784 = vmul.f32 %v545, %v778
    %v785 = vmul.f32 %v783, %v780
    %v786 = vadd.f32 %v784, %v785
    %v787 = vtanh.pop %v786
    %v788 = vmul.f32 %v782, %v787
    %s789 = scalar_lea.vmem [#allocation10], 16
    %790 = vst [vmem:[%s789] sm:$0xff] %v788
    %s791 = scalar_lea.vmem [#allocation4], 96
    %v792 = vld [vmem:[%s791] sm:$0xff]
    %v793 = vld [vmem:[%s791 + $0x8] sm:$0xff]
    %v794 = vld [vmem:[%s791 + $0x10] sm:$0xff]
    %v795 = vld [vmem:[%s791 + $0x18] sm:$0xff]
    %v796 = vld [vmem:[#allocation7] sm:$0xff]
    %v797 = vld [vmem:[#allocation7 + $0x8] sm:$0xff]
    %v798 = vld [vmem:[#allocation7 + $0x10] sm:$0xff]
    %v799 = vld [vmem:[#allocation7 + $0x18] sm:$0xff]
    %v800 = vld [vmem:[#allocation7 + $0x20] sm:$0xff]
    %v801 = vld [vmem:[#allocation7 + $0x28] sm:$0xff]
    %v802 = vld [vmem:[#allocation7 + $0x30] sm:$0xff]
    %v803 = vld [vmem:[#allocation7 + $0x38] sm:$0xff]
    %v804 = vld [vmem:[#allocation7 + $0x40] sm:$0xff]
    %v805 = vld [vmem:[#allocation7 + $0x48] sm:$0xff]
    %v806 = vld [vmem:[#allocation7 + $0x50] sm:$0xff]
    %v807 = vld [vmem:[#allocation7 + $0x58] sm:$0xff]
    %v808 = vld [vmem:[#allocation7 + $0x60] sm:$0xff]
    %v809 = vld [vmem:[#allocation7 + $0x68] sm:$0xff]
    %v810 = vld [vmem:[#allocation7 + $0x70] sm:$0xff]
    %v811 = vld [vmem:[#allocation7 + $0x78] sm:$0xff]
    %v812 = vld [vmem:[#allocation7 + $0x80] sm:$0xff]
    %v813 = vld [vmem:[#allocation7 + $0x88] sm:$0xff]
    %v814 = vld [vmem:[#allocation7 + $0x90] sm:$0xff]
    %v815 = vld [vmem:[#allocation7 + $0x98] sm:$0xff]
    %v816 = vld [vmem:[#allocation7 + $0xa0] sm:$0xff]
    %v817 = vld [vmem:[#allocation7 + $0xa8] sm:$0xff]
    %v818 = vld [vmem:[#allocation7 + $0xb0] sm:$0xff]
    %v819 = vld [vmem:[#allocation7 + $0xb8] sm:$0xff]
    %v820 = vld [vmem:[#allocation7 + $0xc0] sm:$0xff]
    %v821 = vld [vmem:[#allocation7 + $0xc8] sm:$0xff]
    %v822 = vld [vmem:[#allocation7 + $0xd0] sm:$0xff]
    %v823 = vld [vmem:[#allocation7 + $0xd8] sm:$0xff]
    %v824 = vld [vmem:[#allocation7 + $0xe0] sm:$0xff]
    %v825 = vld [vmem:[#allocation7 + $0xe8] sm:$0xff]
    %v826 = vld [vmem:[#allocation7 + $0xf0] sm:$0xff]
    %v827 = vld [vmem:[#allocation7 + $0xf8] sm:$0xff]
    %v828 = vld [vmem:[#allocation7 + $0x100] sm:$0xff]
    %v829 = vld [vmem:[#allocation7 + $0x108] sm:$0xff]
    %v830 = vld [vmem:[#allocation7 + $0x110] sm:$0xff]
    %v831 = vld [vmem:[#allocation7 + $0x118] sm:$0xff]
    %v832 = vld [vmem:[#allocation7 + $0x120] sm:$0xff]
    %v833 = vld [vmem:[#allocation7 + $0x128] sm:$0xff]
    %v834 = vld [vmem:[#allocation7 + $0x130] sm:$0xff]
    %v835 = vld [vmem:[#allocation7 + $0x138] sm:$0xff]
    %v836 = vld [vmem:[#allocation7 + $0x140] sm:$0xff]
    %v837 = vld [vmem:[#allocation7 + $0x148] sm:$0xff]
    %v838 = vld [vmem:[#allocation7 + $0x150] sm:$0xff]
    %v839 = vld [vmem:[#allocation7 + $0x158] sm:$0xff]
    %v840 = vld [vmem:[#allocation7 + $0x160] sm:$0xff]
    %v841 = vld [vmem:[#allocation7 + $0x168] sm:$0xff]
    %v842 = vld [vmem:[#allocation7 + $0x170] sm:$0xff]
    %v843 = vld [vmem:[#allocation7 + $0x178] sm:$0xff]
    %v844 = vld [vmem:[#allocation7 + $0x180] sm:$0xff]
    %v845 = vld [vmem:[#allocation7 + $0x188] sm:$0xff]
    %v846 = vld [vmem:[#allocation7 + $0x190] sm:$0xff]
    %v847 = vld [vmem:[#allocation7 + $0x198] sm:$0xff]
    %v848 = vld [vmem:[#allocation7 + $0x1a0] sm:$0xff]
    %v849 = vld [vmem:[#allocation7 + $0x1a8] sm:$0xff]
    %v850 = vld [vmem:[#allocation7 + $0x1b0] sm:$0xff]
    %v851 = vld [vmem:[#allocation7 + $0x1b8] sm:$0xff]
    %v852 = vld [vmem:[#allocation7 + $0x1c0] sm:$0xff]
    %v853 = vld [vmem:[#allocation7 + $0x1c8] sm:$0xff]
    %v854 = vld [vmem:[#allocation7 + $0x1d0] sm:$0xff]
    %v855 = vld [vmem:[#allocation7 + $0x1d8] sm:$0xff]
    %v856 = vld [vmem:[#allocation7 + $0x1e0] sm:$0xff]
    %v857 = vld [vmem:[#allocation7 + $0x1e8] sm:$0xff]
    %v858 = vld [vmem:[#allocation7 + $0x1f0] sm:$0xff]
    %v859 = vld [vmem:[#allocation7 + $0x1f8] sm:$0xff]
    %860 = vmatprep.subr.mxu0 %v797
    %861 = vmatpush1.msra.mxu0 %v796
    %862 = vmatprep.subr.mxu0 %v801
    %863 = vmatpush1.msra.mxu0 %v800
    %864 = vmatprep.subr.mxu0 %v805
    %865 = vmatpush1.msra.mxu0 %v804
    %866 = vmatprep.subr.mxu0 %v809
    %867 = vmatpush1.msra.mxu0 %v808
    %868 = vmatprep.subr.mxu0 %v813
    %869 = vmatpush1.msra.mxu0 %v812
    %870 = vmatprep.subr.mxu0 %v817
    %871 = vmatpush1.msra.mxu0 %v816
    %872 = vmatprep.subr.mxu0 %v821
    %873 = vmatpush1.msra.mxu0 %v820
    %874 = vmatprep.subr.mxu0 %v825
    %875 = vmatpush1.msra.mxu0 %v824
    %876 = vmatprep.subr.mxu0 %v829
    %877 = vmatpush1.msra.mxu0 %v828
    %878 = vmatprep.subr.mxu0 %v833
    %879 = vmatpush1.msra.mxu0 %v832
    %880 = vmatprep.subr.mxu0 %v837
    %881 = vmatpush1.msra.mxu0 %v836
    %882 = vmatprep.subr.mxu0 %v841
    %883 = vmatpush1.msra.mxu0 %v840
    %884 = vmatprep.subr.mxu0 %v845
    %885 = vmatpush1.msra.mxu0 %v844
    %886 = vmatprep.subr.mxu0 %v849
    %887 = vmatpush1.msra.mxu0 %v848
    %888 = vmatprep.subr.mxu0 %v853
    %889 = vmatpush1.msra.mxu0 %v852
    %890 = vmatprep.subr.mxu0 %v857
    %891 = vmatpush1.msra.mxu0 %v856
    %892 = vmatprep.subr.mxu0 0.0
    %893 = vmatpush1.msra.mxu0 0.0
    %894 = vmatprep.subr.mxu0 0.0
    %895 = vmatpush1.msra.mxu0 0.0
    %896 = vmatprep.subr.mxu0 0.0
    %897 = vmatpush1.msra.mxu0 0.0
    %898 = vmatprep.subr.mxu0 0.0
    %899 = vmatpush1.msra.mxu0 0.0
    %900 = vmatprep.subr.mxu0 0.0
    %901 = vmatpush1.msra.mxu0 0.0
    %902 = vmatprep.subr.mxu0 0.0
    %903 = vmatpush1.msra.mxu0 0.0
    %904 = vmatprep.subr.mxu0 0.0
    %905 = vmatpush1.msra.mxu0 0.0
    %906 = vmatprep.subr.mxu0 0.0
    %907 = vmatpush1.msra.mxu0 0.0
    %908 = vmatprep.subr.mxu0 0.0
    %909 = vmatpush1.msra.mxu0 0.0
    %910 = vmatprep.subr.mxu0 0.0
    %911 = vmatpush1.msra.mxu0 0.0
    %912 = vmatprep.subr.mxu0 0.0
    %913 = vmatpush1.msra.mxu0 0.0
    %914 = vmatprep.subr.mxu0 0.0
    %915 = vmatpush1.msra.mxu0 0.0
    %916 = vmatprep.subr.mxu0 0.0
    %917 = vmatpush1.msra.mxu0 0.0
    %918 = vmatprep.subr.mxu0 0.0
    %919 = vmatpush1.msra.mxu0 0.0
    %920 = vmatprep.subr.mxu0 0.0
    %921 = vmatpush1.msra.mxu0 0.0
    %922 = vmatprep.subr.mxu0 0.0
    %923 = vmatpush1.msra.mxu0 0.0
    %924 = vmatprep.mubr.f32.mxu0 0.0
    %925 = vmatmul.mubr.f32.gmra.mrb[0].mxu0 %v788
    %v926 = vpop.f32.mrb[0].mxu0
    %v927 = vadd.f32 0.0, %v926
    %v928 = vpop.f32.mrb[0].mxu0
    %v929 = vadd.f32 0.0, %v928
    %930 = vdwg.mxu0
    %931 = vmatprep.subr.mxu0 %v799
    %932 = vmatpush1.msra.mxu0 %v798
    %933 = vmatprep.subr.mxu0 %v803
    %934 = vmatpush1.msra.mxu0 %v802
    %935 = vmatprep.subr.mxu0 %v807
    %936 = vmatpush1.msra.mxu0 %v806
    %937 = vmatprep.subr.mxu0 %v811
    %938 = vmatpush1.msra.mxu0 %v810
    %939 = vmatprep.subr.mxu0 %v815
    %940 = vmatpush1.msra.mxu0 %v814
    %941 = vmatprep.subr.mxu0 %v819
    %942 = vmatpush1.msra.mxu0 %v818
    %943 = vmatprep.subr.mxu0 %v823
    %944 = vmatpush1.msra.mxu0 %v822
    %945 = vmatprep.subr.mxu0 %v827
    %946 = vmatpush1.msra.mxu0 %v826
    %947 = vmatprep.subr.mxu0 %v831
    %948 = vmatpush1.msra.mxu0 %v830
    %949 = vmatprep.subr.mxu0 %v835
    %950 = vmatpush1.msra.mxu0 %v834
    %951 = vmatprep.subr.mxu0 %v839
    %952 = vmatpush1.msra.mxu0 %v838
    %953 = vmatprep.subr.mxu0 %v843
    %954 = vmatpush1.msra.mxu0 %v842
    %955 = vmatprep.subr.mxu0 %v847
    %956 = vmatpush1.msra.mxu0 %v846
    %957 = vmatprep.subr.mxu0 %v851
    %958 = vmatpush1.msra.mxu0 %v850
    %959 = vmatprep.subr.mxu0 %v855
    %960 = vmatpush1.msra.mxu0 %v854
    %961 = vmatprep.subr.mxu0 %v859
    %962 = vmatpush1.msra.mxu0 %v858
    %963 = vmatprep.subr.mxu0 0.0
    %964 = vmatpush1.msra.mxu0 0.0
    %965 = vmatprep.subr.mxu0 0.0
    %966 = vmatpush1.msra.mxu0 0.0
    %967 = vmatprep.subr.mxu0 0.0
    %968 = vmatpush1.msra.mxu0 0.0
    %969 = vmatprep.subr.mxu0 0.0
    %970 = vmatpush1.msra.mxu0 0.0
    %971 = vmatprep.subr.mxu0 0.0
    %972 = vmatpush1.msra.mxu0 0.0
    %973 = vmatprep.subr.mxu0 0.0
    %974 = vmatpush1.msra.mxu0 0.0
    %975 = vmatprep.subr.mxu0 0.0
    %976 = vmatpush1.msra.mxu0 0.0
    %977 = vmatprep.subr.mxu0 0.0
    %978 = vmatpush1.msra.mxu0 0.0
    %979 = vmatprep.subr.mxu0 0.0
    %980 = vmatpush1.msra.mxu0 0.0
    %981 = vmatprep.subr.mxu0 0.0
    %982 = vmatpush1.msra.mxu0 0.0
    %983 = vmatprep.subr.mxu0 0.0
    %984 = vmatpush1.msra.mxu0 0.0
    %985 = vmatprep.subr.mxu0 0.0
    %986 = vmatpush1.msra.mxu0 0.0
    %987 = vmatprep.subr.mxu0 0.0
    %988 = vmatpush1.msra.mxu0 0.0
    %989 = vmatprep.subr.mxu0 0.0
    %990 = vmatpush1.msra.mxu0 0.0
    %991 = vmatprep.subr.mxu0 0.0
    %992 = vmatpush1.msra.mxu0 0.0
    %993 = vmatprep.subr.mxu0 0.0
    %994 = vmatpush1.msra.mxu0 0.0
    %995 = vmatprep.mubr.f32.mxu0 0.0
    %996 = vmatmul.mubr.f32.gmra.mrb[0].mxu0 %v788
    %v997 = vpop.f32.mrb[0].mxu0
    %v998 = vadd.f32 0.0, %v997
    %v999 = vpop.f32.mrb[0].mxu0
    %v1000 = vadd.f32 0.0, %v999
    %1001 = vdwg.mxu0
    %v1002 = vadd.f32 %v792, %v927
    %v1003 = vadd.f32 %v793, %v929
    %v1004 = vadd.f32 %v794, %v998
    %v1005 = vadd.f32 %v795, %v1000
    %v1006 = vxor.u32 %v1002, 2147483648
    %v1007 = vxor.u32 %v1003, 2147483648
    %v1008 = vxor.u32 %v1004, 2147483648
    %v1009 = vmul.f32 %v1006, 1.442695
    %v1010 = vpow.pop %v1009
    %v1011 = vmul.f32 %v1007, 1.442695
    %v1012 = vpow.pop %v1011
    %v1013 = vmul.f32 %v1008, 1.442695
    %v1014 = vpow.pop %v1013
    %v1015 = vadd.f32 %v1010, 1.0
    %v1016 = vadd.f32 %v1012, 1.0
    %v1017 = vadd.f32 %v1014, 1.0
    %v1018 = vrcp.pop %v1015
    %v1019 = vmul.f32 1.0, %v1018
    %v1020 = vrcp.pop %v1016
    %v1021 = vmul.f32 1.0, %v1020
    %v1022 = vrcp.pop %v1017
    %v1023 = vmul.f32 1.0, %v1022
    %v1024 = vtanh.pop %v1005
    %v1025 = vmul.f32 %v786, %v1019
    %v1026 = vmul.f32 %v1024, %v1021
    %v1027 = vadd.f32 %v1025, %v1026
    %v1028 = vtanh.pop %v1027
    %v1029 = vmul.f32 %v1023, %v1028
    %s1030 = scalar_lea.vmem [#allocation10], 24
    %1031 = vst [vmem:[%s1030] sm:$0xff] %v1029
    %s1032 = scalar_lea.vmem [#allocation4], 128
    %v1033 = vld [vmem:[%s1032] sm:$0xff]
    %v1034 = vld [vmem:[%s1032 + $0x8] sm:$0xff]
    %v1035 = vld [vmem:[%s1032 + $0x10] sm:$0xff]
    %v1036 = vld [vmem:[%s1032 + $0x18] sm:$0xff]
    %v1037 = vld [vmem:[#allocation7] sm:$0xff]
    %v1038 = vld [vmem:[#allocation7 + $0x8] sm:$0xff]
    %v1039 = vld [vmem:[#allocation7 + $0x10] sm:$0xff]
    %v1040 = vld [vmem:[#allocation7 + $0x18] sm:$0xff]
    %v1041 = vld [vmem:[#allocation7 + $0x20] sm:$0xff]
    %v1042 = vld [vmem:[#allocation7 + $0x28] sm:$0xff]
    %v1043 = vld [vmem:[#allocation7 + $0x30] sm:$0xff]
    %v1044 = vld [vmem:[#allocation7 + $0x38] sm:$0xff]
    %v1045 = vld [vmem:[#allocation7 + $0x40] sm:$0xff]
    %v1046 = vld [vmem:[#allocation7 + $0x48] sm:$0xff]
    %v1047 = vld [vmem:[#allocation7 + $0x50] sm:$0xff]
    %v1048 = vld [vmem:[#allocation7 + $0x58] sm:$0xff]
    %v1049 = vld [vmem:[#allocation7 + $0x60] sm:$0xff]
    %v1050 = vld [vmem:[#allocation7 + $0x68] sm:$0xff]
    %v1051 = vld [vmem:[#allocation7 + $0x70] sm:$0xff]
    %v1052 = vld [vmem:[#allocation7 + $0x78] sm:$0xff]
    %v1053 = vld [vmem:[#allocation7 + $0x80] sm:$0xff]
    %v1054 = vld [vmem:[#allocation7 + $0x88] sm:$0xff]
    %v1055 = vld [vmem:[#allocation7 + $0x90] sm:$0xff]
    %v1056 = vld [vmem:[#allocation7 + $0x98] sm:$0xff]
    %v1057 = vld [vmem:[#allocation7 + $0xa0] sm:$0xff]
    %v1058 = vld [vmem:[#allocation7 + $0xa8] sm:$0xff]
    %v1059 = vld [vmem:[#allocation7 + $0xb0] sm:$0xff]
    %v1060 = vld [vmem:[#allocation7 + $0xb8] sm:$0xff]
    %v1061 = vld [vmem:[#allocation7 + $0xc0] sm:$0xff]
    %v1062 = vld [vmem:[#allocation7 + $0xc8] sm:$0xff]
    %v1063 = vld [vmem:[#allocation7 + $0xd0] sm:$0xff]
    %v1064 = vld [vmem:[#allocation7 + $0xd8] sm:$0xff]
    %v1065 = vld [vmem:[#allocation7 + $0xe0] sm:$0xff]
    %v1066 = vld [vmem:[#allocation7 + $0xe8] sm:$0xff]
    %v1067 = vld [vmem:[#allocation7 + $0xf0] sm:$0xff]
    %v1068 = vld [vmem:[#allocation7 + $0xf8] sm:$0xff]
    %v1069 = vld [vmem:[#allocation7 + $0x100] sm:$0xff]
    %v1070 = vld [vmem:[#allocation7 + $0x108] sm:$0xff]
    %v1071 = vld [vmem:[#allocation7 + $0x110] sm:$0xff]
    %v1072 = vld [vmem:[#allocation7 + $0x118] sm:$0xff]
    %v1073 = vld [vmem:[#allocation7 + $0x120] sm:$0xff]
    %v1074 = vld [vmem:[#allocation7 + $0x128] sm:$0xff]
    %v1075 = vld [vmem:[#allocation7 + $0x130] sm:$0xff]
    %v1076 = vld [vmem:[#allocation7 + $0x138] sm:$0xff]
    %v1077 = vld [vmem:[#allocation7 + $0x140] sm:$0xff]
    %v1078 = vld [vmem:[#allocation7 + $0x148] sm:$0xff]
    %v1079 = vld [vmem:[#allocation7 + $0x150] sm:$0xff]
    %v1080 = vld [vmem:[#allocation7 + $0x158] sm:$0xff]
    %v1081 = vld [vmem:[#allocation7 + $0x160] sm:$0xff]
    %v1082 = vld [vmem:[#allocation7 + $0x168] sm:$0xff]
    %v1083 = vld [vmem:[#allocation7 + $0x170] sm:$0xff]
    %v1084 = vld [vmem:[#allocation7 + $0x178] sm:$0xff]
    %v1085 = vld [vmem:[#allocation7 + $0x180] sm:$0xff]
    %v1086 = vld [vmem:[#allocation7 + $0x188] sm:$0xff]
    %v1087 = vld [vmem:[#allocation7 + $0x190] sm:$0xff]
    %v1088 = vld [vmem:[#allocation7 + $0x198] sm:$0xff]
    %v1089 = vld [vmem:[#allocation7 + $0x1a0] sm:$0xff]
    %v1090 = vld [vmem:[#allocation7 + $0x1a8] sm:$0xff]
    %v1091 = vld [vmem:[#allocation7 + $0x1b0] sm:$0xff]
    %v1092 = vld [vmem:[#allocation7 + $0x1b8] sm:$0xff]
    %v1093 = vld [vmem:[#allocation7 + $0x1c0] sm:$0xff]
    %v1094 = vld [vmem:[#allocation7 + $0x1c8] sm:$0xff]
    %v1095 = vld [vmem:[#allocation7 + $0x1d0] sm:$0xff]
    %v1096 = vld [vmem:[#allocation7 + $0x1d8] sm:$0xff]
    %v1097 = vld [vmem:[#allocation7 + $0x1e0] sm:$0xff]
    %v1098 = vld [vmem:[#allocation7 + $0x1e8] sm:$0xff]
    %v1099 = vld [vmem:[#allocation7 + $0x1f0] sm:$0xff]
    %v1100 = vld [vmem:[#allocation7 + $0x1f8] sm:$0xff]
    %1101 = vmatprep.subr.mxu0 %v1038
    %1102 = vmatpush1.msra.mxu0 %v1037
    %1103 = vmatprep.subr.mxu0 %v1042
    %1104 = vmatpush1.msra.mxu0 %v1041
    %1105 = vmatprep.subr.mxu0 %v1046
    %1106 = vmatpush1.msra.mxu0 %v1045
    %1107 = vmatprep.subr.mxu0 %v1050
    %1108 = vmatpush1.msra.mxu0 %v1049
    %1109 = vmatprep.subr.mxu0 %v1054
    %1110 = vmatpush1.msra.mxu0 %v1053
    %1111 = vmatprep.subr.mxu0 %v1058
    %1112 = vmatpush1.msra.mxu0 %v1057
    %1113 = vmatprep.subr.mxu0 %v1062
    %1114 = vmatpush1.msra.mxu0 %v1061
    %1115 = vmatprep.subr.mxu0 %v1066
    %1116 = vmatpush1.msra.mxu0 %v1065
    %1117 = vmatprep.subr.mxu0 %v1070
    %1118 = vmatpush1.msra.mxu0 %v1069
    %1119 = vmatprep.subr.mxu0 %v1074
    %1120 = vmatpush1.msra.mxu0 %v1073
    %1121 = vmatprep.subr.mxu0 %v1078
    %1122 = vmatpush1.msra.mxu0 %v1077
    %1123 = vmatprep.subr.mxu0 %v1082
    %1124 = vmatpush1.msra.mxu0 %v1081
    %1125 = vmatprep.subr.mxu0 %v1086
    %1126 = vmatpush1.msra.mxu0 %v1085
    %1127 = vmatprep.subr.mxu0 %v1090
    %1128 = vmatpush1.msra.mxu0 %v1089
    %1129 = vmatprep.subr.mxu0 %v1094
    %1130 = vmatpush1.msra.mxu0 %v1093
    %1131 = vmatprep.subr.mxu0 %v1098
    %1132 = vmatpush1.msra.mxu0 %v1097
    %1133 = vmatprep.subr.mxu0 0.0
    %1134 = vmatpush1.msra.mxu0 0.0
    %1135 = vmatprep.subr.mxu0 0.0
    %1136 = vmatpush1.msra.mxu0 0.0
    %1137 = vmatprep.subr.mxu0 0.0
    %1138 = vmatpush1.msra.mxu0 0.0
    %1139 = vmatprep.subr.mxu0 0.0
    %1140 = vmatpush1.msra.mxu0 0.0
    %1141 = vmatprep.subr.mxu0 0.0
    %1142 = vmatpush1.msra.mxu0 0.0
    %1143 = vmatprep.subr.mxu0 0.0
    %1144 = vmatpush1.msra.mxu0 0.0
    %1145 = vmatprep.subr.mxu0 0.0
    %1146 = vmatpush1.msra.mxu0 0.0
    %1147 = vmatprep.subr.mxu0 0.0
    %1148 = vmatpush1.msra.mxu0 0.0
    %1149 = vmatprep.subr.mxu0 0.0
    %1150 = vmatpush1.msra.mxu0 0.0
    %1151 = vmatprep.subr.mxu0 0.0
    %1152 = vmatpush1.msra.mxu0 0.0
    %1153 = vmatprep.subr.mxu0 0.0
    %1154 = vmatpush1.msra.mxu0 0.0
    %1155 = vmatprep.subr.mxu0 0.0
    %1156 = vmatpush1.msra.mxu0 0.0
    %1157 = vmatprep.subr.mxu0 0.0
    %1158 = vmatpush1.msra.mxu0 0.0
    %1159 = vmatprep.subr.mxu0 0.0
    %1160 = vmatpush1.msra.mxu0 0.0
    %1161 = vmatprep.subr.mxu0 0.0
    %1162 = vmatpush1.msra.mxu0 0.0
    %1163 = vmatprep.subr.mxu0 0.0
    %1164 = vmatpush1.msra.mxu0 0.0
    %1165 = vmatprep.mubr.f32.mxu0 0.0
    %1166 = vmatmul.mubr.f32.gmra.mrb[0].mxu0 %v1029
    %v1167 = vpop.f32.mrb[0].mxu0
    %v1168 = vadd.f32 0.0, %v1167
    %v1169 = vpop.f32.mrb[0].mxu0
    %v1170 = vadd.f32 0.0, %v1169
    %1171 = vdwg.mxu0
    %1172 = vmatprep.subr.mxu0 %v1040
    %1173 = vmatpush1.msra.mxu0 %v1039
    %1174 = vmatprep.subr.mxu0 %v1044
    %1175 = vmatpush1.msra.mxu0 %v1043
    %1176 = vmatprep.subr.mxu0 %v1048
    %1177 = vmatpush1.msra.mxu0 %v1047
    %1178 = vmatprep.subr.mxu0 %v1052
    %1179 = vmatpush1.msra.mxu0 %v1051
    %1180 = vmatprep.subr.mxu0 %v1056
    %1181 = vmatpush1.msra.mxu0 %v1055
    %1182 = vmatprep.subr.mxu0 %v1060
    %1183 = vmatpush1.msra.mxu0 %v1059
    %1184 = vmatprep.subr.mxu0 %v1064
    %1185 = vmatpush1.msra.mxu0 %v1063
    %1186 = vmatprep.subr.mxu0 %v1068
    %1187 = vmatpush1.msra.mxu0 %v1067
    %1188 = vmatprep.subr.mxu0 %v1072
    %1189 = vmatpush1.msra.mxu0 %v1071
    %1190 = vmatprep.subr.mxu0 %v1076
    %1191 = vmatpush1.msra.mxu0 %v1075
    %1192 = vmatprep.subr.mxu0 %v1080
    %1193 = vmatpush1.msra.mxu0 %v1079
    %1194 = vmatprep.subr.mxu0 %v1084
    %1195 = vmatpush1.msra.mxu0 %v1083
    %1196 = vmatprep.subr.mxu0 %v1088
    %1197 = vmatpush1.msra.mxu0 %v1087
    %1198 = vmatprep.subr.mxu0 %v1092
    %1199 = vmatpush1.msra.mxu0 %v1091
    %1200 = vmatprep.subr.mxu0 %v1096
    %1201 = vmatpush1.msra.mxu0 %v1095
    %1202 = vmatprep.subr.mxu0 %v1100
    %1203 = vmatpush1.msra.mxu0 %v1099
    %1204 = vmatprep.subr.mxu0 0.0
    %1205 = vmatpush1.msra.mxu0 0.0
    %1206 = vmatprep.subr.mxu0 0.0
    %1207 = vmatpush1.msra.mxu0 0.0
    %1208 = vmatprep.subr.mxu0 0.0
    %1209 = vmatpush1.msra.mxu0 0.0
    %1210 = vmatprep.subr.mxu0 0.0
    %1211 = vmatpush1.msra.mxu0 0.0
    %1212 = vmatprep.subr.mxu0 0.0
    %1213 = vmatpush1.msra.mxu0 0.0
    %1214 = vmatprep.subr.mxu0 0.0
    %1215 = vmatpush1.msra.mxu0 0.0
    %1216 = vmatprep.subr.mxu0 0.0
    %1217 = vmatpush1.msra.mxu0 0.0
    %1218 = vmatprep.subr.mxu0 0.0
    %1219 = vmatpush1.msra.mxu0 0.0
    %1220 = vmatprep.subr.mxu0 0.0
    %1221 = vmatpush1.msra.mxu0 0.0
    %1222 = vmatprep.subr.mxu0 0.0
    %1223 = vmatpush1.msra.mxu0 0.0
    %1224 = vmatprep.subr.mxu0 0.0
    %1225 = vmatpush1.msra.mxu0 0.0
    %1226 = vmatprep.subr.mxu0 0.0
    %1227 = vmatpush1.msra.mxu0 0.0
    %1228 = vmatprep.subr.mxu0 0.0
    %1229 = vmatpush1.msra.mxu0 0.0
    %1230 = vmatprep.subr.mxu0 0.0
    %1231 = vmatpush1.msra.mxu0 0.0
    %1232 = vmatprep.subr.mxu0 0.0
    %1233 = vmatpush1.msra.mxu0 0.0
    %1234 = vmatprep.subr.mxu0 0.0
    %1235 = vmatpush1.msra.mxu0 0.0
    %1236 = vmatprep.mubr.f32.mxu0 0.0
    %1237 = vmatmul.mubr.f32.gmra.mrb[0].mxu0 %v1029
    %v1238 = vpop.f32.mrb[0].mxu0
    %v1239 = vadd.f32 0.0, %v1238
    %v1240 = vpop.f32.mrb[0].mxu0
    %v1241 = vadd.f32 0.0, %v1240
    %1242 = vdwg.mxu0
    %v1243 = vadd.f32 %v1033, %v1168
    %v1244 = vadd.f32 %v1034, %v1170
    %v1245 = vadd.f32 %v1035, %v1239
    %v1246 = vadd.f32 %v1036, %v1241
    %v1247 = vxor.u32 %v1243, 2147483648
    %v1248 = vxor.u32 %v1244, 2147483648
    %v1249 = vxor.u32 %v1245, 2147483648
    %v1250 = vmul.f32 %v1247, 1.442695
    %v1251 = vpow.pop %v1250
    %v1252 = vmul.f32 %v1248, 1.442695
    %v1253 = vpow.pop %v1252
    %v1254 = vmul.f32 %v1249, 1.442695
    %v1255 = vpow.pop %v1254
    %v1256 = vadd.f32 %v1251, 1.0
    %v1257 = vadd.f32 %v1253, 1.0
    %v1258 = vadd.f32 %v1255, 1.0
    %v1259 = vrcp.pop %v1256
    %v1260 = vmul.f32 1.0, %v1259
    %v1261 = vrcp.pop %v1257
    %v1262 = vmul.f32 1.0, %v1261
    %v1263 = vrcp.pop %v1258
    %v1264 = vmul.f32 1.0, %v1263
    %v1265 = vtanh.pop %v1246
    %v1266 = vmul.f32 %v1027, %v1260
    %v1267 = vmul.f32 %v1265, %v1262
    %v1268 = vadd.f32 %v1266, %v1267
    %v1269 = vtanh.pop %v1268
    %v1270 = vmul.f32 %v1264, %v1269
    %s1271 = scalar_lea.vmem [#allocation10], 32
    %1272 = vst [vmem:[%s1271] sm:$0xff] %v1270
    %s1273 = scalar_lea.vmem [#allocation4], 160
    %v1274 = vld [vmem:[%s1273] sm:$0xff]
    %v1275 = vld [vmem:[%s1273 + $0x8] sm:$0xff]
    %v1276 = vld [vmem:[%s1273 + $0x10] sm:$0xff]
    %v1277 = vld [vmem:[%s1273 + $0x18] sm:$0xff]
    %v1278 = vld [vmem:[#allocation7] sm:$0xff]
    %v1279 = vld [vmem:[#allocation7 + $0x8] sm:$0xff]
    %v1280 = vld [vmem:[#allocation7 + $0x10] sm:$0xff]
    %v1281 = vld [vmem:[#allocation7 + $0x18] sm:$0xff]
    %v1282 = vld [vmem:[#allocation7 + $0x20] sm:$0xff]
    %v1283 = vld [vmem:[#allocation7 + $0x28] sm:$0xff]
    %v1284 = vld [vmem:[#allocation7 + $0x30] sm:$0xff]
    %v1285 = vld [vmem:[#allocation7 + $0x38] sm:$0xff]
    %v1286 = vld [vmem:[#allocation7 + $0x40] sm:$0xff]
    %v1287 = vld [vmem:[#allocation7 + $0x48] sm:$0xff]
    %v1288 = vld [vmem:[#allocation7 + $0x50] sm:$0xff]
    %v1289 = vld [vmem:[#allocation7 + $0x58] sm:$0xff]
    %v1290 = vld [vmem:[#allocation7 + $0x60] sm:$0xff]
    %v1291 = vld [vmem:[#allocation7 + $0x68] sm:$0xff]
    %v1292 = vld [vmem:[#allocation7 + $0x70] sm:$0xff]
    %v1293 = vld [vmem:[#allocation7 + $0x78] sm:$0xff]
    %v1294 = vld [vmem:[#allocation7 + $0x80] sm:$0xff]
    %v1295 = vld [vmem:[#allocation7 + $0x88] sm:$0xff]
    %v1296 = vld [vmem:[#allocation7 + $0x90] sm:$0xff]
    %v1297 = vld [vmem:[#allocation7 + $0x98] sm:$0xff]
    %v1298 = vld [vmem:[#allocation7 + $0xa0] sm:$0xff]
    %v1299 = vld [vmem:[#allocation7 + $0xa8] sm:$0xff]
    %v1300 = vld [vmem:[#allocation7 + $0xb0] sm:$0xff]
    %v1301 = vld [vmem:[#allocation7 + $0xb8] sm:$0xff]
    %v1302 = vld [vmem:[#allocation7 + $0xc0] sm:$0xff]
    %v1303 = vld [vmem:[#allocation7 + $0xc8] sm:$0xff]
    %v1304 = vld [vmem:[#allocation7 + $0xd0] sm:$0xff]
    %v1305 = vld [vmem:[#allocation7 + $0xd8] sm:$0xff]
    %v1306 = vld [vmem:[#allocation7 + $0xe0] sm:$0xff]
    %v1307 = vld [vmem:[#allocation7 + $0xe8] sm:$0xff]
    %v1308 = vld [vmem:[#allocation7 + $0xf0] sm:$0xff]
    %v1309 = vld [vmem:[#allocation7 + $0xf8] sm:$0xff]
    %v1310 = vld [vmem:[#allocation7 + $0x100] sm:$0xff]
    %v1311 = vld [vmem:[#allocation7 + $0x108] sm:$0xff]
    %v1312 = vld [vmem:[#allocation7 + $0x110] sm:$0xff]
    %v1313 = vld [vmem:[#allocation7 + $0x118] sm:$0xff]
    %v1314 = vld [vmem:[#allocation7 + $0x120] sm:$0xff]
    %v1315 = vld [vmem:[#allocation7 + $0x128] sm:$0xff]
    %v1316 = vld [vmem:[#allocation7 + $0x130] sm:$0xff]
    %v1317 = vld [vmem:[#allocation7 + $0x138] sm:$0xff]
    %v1318 = vld [vmem:[#allocation7 + $0x140] sm:$0xff]
    %v1319 = vld [vmem:[#allocation7 + $0x148] sm:$0xff]
    %v1320 = vld [vmem:[#allocation7 + $0x150] sm:$0xff]
    %v1321 = vld [vmem:[#allocation7 + $0x158] sm:$0xff]
    %v1322 = vld [vmem:[#allocation7 + $0x160] sm:$0xff]
    %v1323 = vld [vmem:[#allocation7 + $0x168] sm:$0xff]
    %v1324 = vld [vmem:[#allocation7 + $0x170] sm:$0xff]
    %v1325 = vld [vmem:[#allocation7 + $0x178] sm:$0xff]
    %v1326 = vld [vmem:[#allocation7 + $0x180] sm:$0xff]
    %v1327 = vld [vmem:[#allocation7 + $0x188] sm:$0xff]
    %v1328 = vld [vmem:[#allocation7 + $0x190] sm:$0xff]
    %v1329 = vld [vmem:[#allocation7 + $0x198] sm:$0xff]
    %v1330 = vld [vmem:[#allocation7 + $0x1a0] sm:$0xff]
    %v1331 = vld [vmem:[#allocation7 + $0x1a8] sm:$0xff]
    %v1332 = vld [vmem:[#allocation7 + $0x1b0] sm:$0xff]
    %v1333 = vld [vmem:[#allocation7 + $0x1b8] sm:$0xff]
    %v1334 = vld [vmem:[#allocation7 + $0x1c0] sm:$0xff]
    %v1335 = vld [vmem:[#allocation7 + $0x1c8] sm:$0xff]
    %v1336 = vld [vmem:[#allocation7 + $0x1d0] sm:$0xff]
    %v1337 = vld [vmem:[#allocation7 + $0x1d8] sm:$0xff]
    %v1338 = vld [vmem:[#allocation7 + $0x1e0] sm:$0xff]
    %v1339 = vld [vmem:[#allocation7 + $0x1e8] sm:$0xff]
    %v1340 = vld [vmem:[#allocation7 + $0x1f0] sm:$0xff]
    %v1341 = vld [vmem:[#allocation7 + $0x1f8] sm:$0xff]
    %1342 = vmatprep.subr.mxu0 %v1279
    %1343 = vmatpush1.msra.mxu0 %v1278
    %1344 = vmatprep.subr.mxu0 %v1283
    %1345 = vmatpush1.msra.mxu0 %v1282
    %1346 = vmatprep.subr.mxu0 %v1287
    %1347 = vmatpush1.msra.mxu0 %v1286
    %1348 = vmatprep.subr.mxu0 %v1291
    %1349 = vmatpush1.msra.mxu0 %v1290
    %1350 = vmatprep.subr.mxu0 %v1295
    %1351 = vmatpush1.msra.mxu0 %v1294
    %1352 = vmatprep.subr.mxu0 %v1299
    %1353 = vmatpush1.msra.mxu0 %v1298
    %1354 = vmatprep.subr.mxu0 %v1303
    %1355 = vmatpush1.msra.mxu0 %v1302
    %1356 = vmatprep.subr.mxu0 %v1307
    %1357 = vmatpush1.msra.mxu0 %v1306
    %1358 = vmatprep.subr.mxu0 %v1311
    %1359 = vmatpush1.msra.mxu0 %v1310
    %1360 = vmatprep.subr.mxu0 %v1315
    %1361 = vmatpush1.msra.mxu0 %v1314
    %1362 = vmatprep.subr.mxu0 %v1319
    %1363 = vmatpush1.msra.mxu0 %v1318
    %1364 = vmatprep.subr.mxu0 %v1323
    %1365 = vmatpush1.msra.mxu0 %v1322
    %1366 = vmatprep.subr.mxu0 %v1327
    %1367 = vmatpush1.msra.mxu0 %v1326
    %1368 = vmatprep.subr.mxu0 %v1331
    %1369 = vmatpush1.msra.mxu0 %v1330
    %1370 = vmatprep.subr.mxu0 %v1335
    %1371 = vmatpush1.msra.mxu0 %v1334
    %1372 = vmatprep.subr.mxu0 %v1339
    %1373 = vmatpush1.msra.mxu0 %v1338
    %1374 = vmatprep.subr.mxu0 0.0
    %1375 = vmatpush1.msra.mxu0 0.0
    %1376 = vmatprep.subr.mxu0 0.0
    %1377 = vmatpush1.msra.mxu0 0.0
    %1378 = vmatprep.subr.mxu0 0.0
    %1379 = vmatpush1.msra.mxu0 0.0
    %1380 = vmatprep.subr.mxu0 0.0
    %1381 = vmatpush1.msra.mxu0 0.0
    %1382 = vmatprep.subr.mxu0 0.0
    %1383 = vmatpush1.msra.mxu0 0.0
    %1384 = vmatprep.subr.mxu0 0.0
    %1385 = vmatpush1.msra.mxu0 0.0
    %1386 = vmatprep.subr.mxu0 0.0
    %1387 = vmatpush1.msra.mxu0 0.0
    %1388 = vmatprep.subr.mxu0 0.0
    %1389 = vmatpush1.msra.mxu0 0.0
    %1390 = vmatprep.subr.mxu0 0.0
    %1391 = vmatpush1.msra.mxu0 0.0
    %1392 = vmatprep.subr.mxu0 0.0
    %1393 = vmatpush1.msra.mxu0 0.0
    %1394 = vmatprep.subr.mxu0 0.0
    %1395 = vmatpush1.msra.mxu0 0.0
    %1396 = vmatprep.subr.mxu0 0.0
    %1397 = vmatpush1.msra.mxu0 0.0
    %1398 = vmatprep.subr.mxu0 0.0
    %1399 = vmatpush1.msra.mxu0 0.0
    %1400 = vmatprep.subr.mxu0 0.0
    %1401 = vmatpush1.msra.mxu0 0.0
    %1402 = vmatprep.subr.mxu0 0.0
    %1403 = vmatpush1.msra.mxu0 0.0
    %1404 = vmatprep.subr.mxu0 0.0
    %1405 = vmatpush1.msra.mxu0 0.0
    %1406 = vmatprep.mubr.f32.mxu0 0.0
    %1407 = vmatmul.mubr.f32.gmra.mrb[0].mxu0 %v1270
    %v1408 = vpop.f32.mrb[0].mxu0
    %v1409 = vadd.f32 0.0, %v1408
    %v1410 = vpop.f32.mrb[0].mxu0
    %v1411 = vadd.f32 0.0, %v1410
    %1412 = vdwg.mxu0
    %1413 = vmatprep.subr.mxu0 %v1281
    %1414 = vmatpush1.msra.mxu0 %v1280
    %1415 = vmatprep.subr.mxu0 %v1285
    %1416 = vmatpush1.msra.mxu0 %v1284
    %1417 = vmatprep.subr.mxu0 %v1289
    %1418 = vmatpush1.msra.mxu0 %v1288
    %1419 = vmatprep.subr.mxu0 %v1293
    %1420 = vmatpush1.msra.mxu0 %v1292
    %1421 = vmatprep.subr.mxu0 %v1297
    %1422 = vmatpush1.msra.mxu0 %v1296
    %1423 = vmatprep.subr.mxu0 %v1301
    %1424 = vmatpush1.msra.mxu0 %v1300
    %1425 = vmatprep.subr.mxu0 %v1305
    %1426 = vmatpush1.msra.mxu0 %v1304
    %1427 = vmatprep.subr.mxu0 %v1309
    %1428 = vmatpush1.msra.mxu0 %v1308
    %1429 = vmatprep.subr.mxu0 %v1313
    %1430 = vmatpush1.msra.mxu0 %v1312
    %1431 = vmatprep.subr.mxu0 %v1317
    %1432 = vmatpush1.msra.mxu0 %v1316
    %1433 = vmatprep.subr.mxu0 %v1321
    %1434 = vmatpush1.msra.mxu0 %v1320
    %1435 = vmatprep.subr.mxu0 %v1325
    %1436 = vmatpush1.msra.mxu0 %v1324
    %1437 = vmatprep.subr.mxu0 %v1329
    %1438 = vmatpush1.msra.mxu0 %v1328
    %1439 = vmatprep.subr.mxu0 %v1333
    %1440 = vmatpush1.msra.mxu0 %v1332
    %1441 = vmatprep.subr.mxu0 %v1337
    %1442 = vmatpush1.msra.mxu0 %v1336
    %1443 = vmatprep.subr.mxu0 %v1341
    %1444 = vmatpush1.msra.mxu0 %v1340
    %1445 = vmatprep.subr.mxu0 0.0
    %1446 = vmatpush1.msra.mxu0 0.0
    %1447 = vmatprep.subr.mxu0 0.0
    %1448 = vmatpush1.msra.mxu0 0.0
    %1449 = vmatprep.subr.mxu0 0.0
    %1450 = vmatpush1.msra.mxu0 0.0
    %1451 = vmatprep.subr.mxu0 0.0
    %1452 = vmatpush1.msra.mxu0 0.0
    %1453 = vmatprep.subr.mxu0 0.0
    %1454 = vmatpush1.msra.mxu0 0.0
    %1455 = vmatprep.subr.mxu0 0.0
    %1456 = vmatpush1.msra.mxu0 0.0
    %1457 = vmatprep.subr.mxu0 0.0
    %1458 = vmatpush1.msra.mxu0 0.0
    %1459 = vmatprep.subr.mxu0 0.0
    %1460 = vmatpush1.msra.mxu0 0.0
    %1461 = vmatprep.subr.mxu0 0.0
    %1462 = vmatpush1.msra.mxu0 0.0
    %1463 = vmatprep.subr.mxu0 0.0
    %1464 = vmatpush1.msra.mxu0 0.0
    %1465 = vmatprep.subr.mxu0 0.0
    %1466 = vmatpush1.msra.mxu0 0.0
    %1467 = vmatprep.subr.mxu0 0.0
    %1468 = vmatpush1.msra.mxu0 0.0
    %1469 = vmatprep.subr.mxu0 0.0
    %1470 = vmatpush1.msra.mxu0 0.0
    %1471 = vmatprep.subr.mxu0 0.0
    %1472 = vmatpush1.msra.mxu0 0.0
    %1473 = vmatprep.subr.mxu0 0.0
    %1474 = vmatpush1.msra.mxu0 0.0
    %1475 = vmatprep.subr.mxu0 0.0
    %1476 = vmatpush1.msra.mxu0 0.0
    %1477 = vmatprep.mubr.f32.mxu0 0.0
    %1478 = vmatmul.mubr.f32.gmra.mrb[0].mxu0 %v1270
    %v1479 = vpop.f32.mrb[0].mxu0
    %v1480 = vadd.f32 0.0, %v1479
    %v1481 = vpop.f32.mrb[0].mxu0
    %v1482 = vadd.f32 0.0, %v1481
    %1483 = vdwg.mxu0
    %v1484 = vadd.f32 %v1274, %v1409
    %v1485 = vadd.f32 %v1275, %v1411
    %v1486 = vadd.f32 %v1276, %v1480
    %v1487 = vadd.f32 %v1277, %v1482
    %v1488 = vxor.u32 %v1484, 2147483648
    %v1489 = vxor.u32 %v1485, 2147483648
    %v1490 = vxor.u32 %v1486, 2147483648
    %v1491 = vmul.f32 %v1488, 1.442695
    %v1492 = vpow.pop %v1491
    %v1493 = vmul.f32 %v1489, 1.442695
    %v1494 = vpow.pop %v1493
    %v1495 = vmul.f32 %v1490, 1.442695
    %v1496 = vpow.pop %v1495
    %v1497 = vadd.f32 %v1492, 1.0
    %v1498 = vadd.f32 %v1494, 1.0
    %v1499 = vadd.f32 %v1496, 1.0
    %v1500 = vrcp.pop %v1497
    %v1501 = vmul.f32 1.0, %v1500
    %v1502 = vrcp.pop %v1498
    %v1503 = vmul.f32 1.0, %v1502
    %v1504 = vrcp.pop %v1499
    %v1505 = vmul.f32 1.0, %v1504
    %v1506 = vtanh.pop %v1487
    %v1507 = vmul.f32 %v1268, %v1501
    %v1508 = vmul.f32 %v1506, %v1503
    %v1509 = vadd.f32 %v1507, %v1508
    %v1510 = vtanh.pop %v1509
    %v1511 = vmul.f32 %v1505, %v1510
    %s1512 = scalar_lea.vmem [#allocation10], 40
    %1513 = vst [vmem:[%s1512] sm:$0xff] %v1511
    %s1514 = scalar_lea.vmem [#allocation4], 192
    %v1515 = vld [vmem:[%s1514] sm:$0xff]
    %v1516 = vld [vmem:[%s1514 + $0x8] sm:$0xff]
    %v1517 = vld [vmem:[%s1514 + $0x10] sm:$0xff]
    %v1518 = vld [vmem:[%s1514 + $0x18] sm:$0xff]
    %v1519 = vld [vmem:[#allocation7] sm:$0xff]
    %v1520 = vld [vmem:[#allocation7 + $0x8] sm:$0xff]
    %v1521 = vld [vmem:[#allocation7 + $0x10] sm:$0xff]
    %v1522 = vld [vmem:[#allocation7 + $0x18] sm:$0xff]
    %v1523 = vld [vmem:[#allocation7 + $0x20] sm:$0xff]
    %v1524 = vld [vmem:[#allocation7 + $0x28] sm:$0xff]
    %v1525 = vld [vmem:[#allocation7 + $0x30] sm:$0xff]
    %v1526 = vld [vmem:[#allocation7 + $0x38] sm:$0xff]
    %v1527 = vld [vmem:[#allocation7 + $0x40] sm:$0xff]
    %v1528 = vld [vmem:[#allocation7 + $0x48] sm:$0xff]
    %v1529 = vld [vmem:[#allocation7 + $0x50] sm:$0xff]
    %v1530 = vld [vmem:[#allocation7 + $0x58] sm:$0xff]
    %v1531 = vld [vmem:[#allocation7 + $0x60] sm:$0xff]
    %v1532 = vld [vmem:[#allocation7 + $0x68] sm:$0xff]
    %v1533 = vld [vmem:[#allocation7 + $0x70] sm:$0xff]
    %v1534 = vld [vmem:[#allocation7 + $0x78] sm:$0xff]
    %v1535 = vld [vmem:[#allocation7 + $0x80] sm:$0xff]
    %v1536 = vld [vmem:[#allocation7 + $0x88] sm:$0xff]
    %v1537 = vld [vmem:[#allocation7 + $0x90] sm:$0xff]
    %v1538 = vld [vmem:[#allocation7 + $0x98] sm:$0xff]
    %v1539 = vld [vmem:[#allocation7 + $0xa0] sm:$0xff]
    %v1540 = vld [vmem:[#allocation7 + $0xa8] sm:$0xff]
    %v1541 = vld [vmem:[#allocation7 + $0xb0] sm:$0xff]
    %v1542 = vld [vmem:[#allocation7 + $0xb8] sm:$0xff]
    %v1543 = vld [vmem:[#allocation7 + $0xc0] sm:$0xff]
    %v1544 = vld [vmem:[#allocation7 + $0xc8] sm:$0xff]
    %v1545 = vld [vmem:[#allocation7 + $0xd0] sm:$0xff]
    %v1546 = vld [vmem:[#allocation7 + $0xd8] sm:$0xff]
    %v1547 = vld [vmem:[#allocation7 + $0xe0] sm:$0xff]
    %v1548 = vld [vmem:[#allocation7 + $0xe8] sm:$0xff]
    %v1549 = vld [vmem:[#allocation7 + $0xf0] sm:$0xff]
    %v1550 = vld [vmem:[#allocation7 + $0xf8] sm:$0xff]
    %v1551 = vld [vmem:[#allocation7 + $0x100] sm:$0xff]
    %v1552 = vld [vmem:[#allocation7 + $0x108] sm:$0xff]
    %v1553 = vld [vmem:[#allocation7 + $0x110] sm:$0xff]
    %v1554 = vld [vmem:[#allocation7 + $0x118] sm:$0xff]
    %v1555 = vld [vmem:[#allocation7 + $0x120] sm:$0xff]
    %v1556 = vld [vmem:[#allocation7 + $0x128] sm:$0xff]
    %v1557 = vld [vmem:[#allocation7 + $0x130] sm:$0xff]
    %v1558 = vld [vmem:[#allocation7 + $0x138] sm:$0xff]
    %v1559 = vld [vmem:[#allocation7 + $0x140] sm:$0xff]
    %v1560 = vld [vmem:[#allocation7 + $0x148] sm:$0xff]
    %v1561 = vld [vmem:[#allocation7 + $0x150] sm:$0xff]
    %v1562 = vld [vmem:[#allocation7 + $0x158] sm:$0xff]
    %v1563 = vld [vmem:[#allocation7 + $0x160] sm:$0xff]
    %v1564 = vld [vmem:[#allocation7 + $0x168] sm:$0xff]
    %v1565 = vld [vmem:[#allocation7 + $0x170] sm:$0xff]
    %v1566 = vld [vmem:[#allocation7 + $0x178] sm:$0xff]
    %v1567 = vld [vmem:[#allocation7 + $0x180] sm:$0xff]
    %v1568 = vld [vmem:[#allocation7 + $0x188] sm:$0xff]
    %v1569 = vld [vmem:[#allocation7 + $0x190] sm:$0xff]
    %v1570 = vld [vmem:[#allocation7 + $0x198] sm:$0xff]
    %v1571 = vld [vmem:[#allocation7 + $0x1a0] sm:$0xff]
    %v1572 = vld [vmem:[#allocation7 + $0x1a8] sm:$0xff]
    %v1573 = vld [vmem:[#allocation7 + $0x1b0] sm:$0xff]
    %v1574 = vld [vmem:[#allocation7 + $0x1b8] sm:$0xff]
    %v1575 = vld [vmem:[#allocation7 + $0x1c0] sm:$0xff]
    %v1576 = vld [vmem:[#allocation7 + $0x1c8] sm:$0xff]
    %v1577 = vld [vmem:[#allocation7 + $0x1d0] sm:$0xff]
    %v1578 = vld [vmem:[#allocation7 + $0x1d8] sm:$0xff]
    %v1579 = vld [vmem:[#allocation7 + $0x1e0] sm:$0xff]
    %v1580 = vld [vmem:[#allocation7 + $0x1e8] sm:$0xff]
    %v1581 = vld [vmem:[#allocation7 + $0x1f0] sm:$0xff]
    %v1582 = vld [vmem:[#allocation7 + $0x1f8] sm:$0xff]
    %1583 = vmatprep.subr.mxu0 %v1520
    %1584 = vmatpush1.msra.mxu0 %v1519
    %1585 = vmatprep.subr.mxu0 %v1524
    %1586 = vmatpush1.msra.mxu0 %v1523
    %1587 = vmatprep.subr.mxu0 %v1528
    %1588 = vmatpush1.msra.mxu0 %v1527
    %1589 = vmatprep.subr.mxu0 %v1532
    %1590 = vmatpush1.msra.mxu0 %v1531
    %1591 = vmatprep.subr.mxu0 %v1536
    %1592 = vmatpush1.msra.mxu0 %v1535
    %1593 = vmatprep.subr.mxu0 %v1540
    %1594 = vmatpush1.msra.mxu0 %v1539
    %1595 = vmatprep.subr.mxu0 %v1544
    %1596 = vmatpush1.msra.mxu0 %v1543
    %1597 = vmatprep.subr.mxu0 %v1548
    %1598 = vmatpush1.msra.mxu0 %v1547
    %1599 = vmatprep.subr.mxu0 %v1552
    %1600 = vmatpush1.msra.mxu0 %v1551
    %1601 = vmatprep.subr.mxu0 %v1556
    %1602 = vmatpush1.msra.mxu0 %v1555
    %1603 = vmatprep.subr.mxu0 %v1560
    %1604 = vmatpush1.msra.mxu0 %v1559
    %1605 = vmatprep.subr.mxu0 %v1564
    %1606 = vmatpush1.msra.mxu0 %v1563
    %1607 = vmatprep.subr.mxu0 %v1568
    %1608 = vmatpush1.msra.mxu0 %v1567
    %1609 = vmatprep.subr.mxu0 %v1572
    %1610 = vmatpush1.msra.mxu0 %v1571
    %1611 = vmatprep.subr.mxu0 %v1576
    %1612 = vmatpush1.msra.mxu0 %v1575
    %1613 = vmatprep.subr.mxu0 %v1580
    %1614 = vmatpush1.msra.mxu0 %v1579
    %1615 = vmatprep.subr.mxu0 0.0
    %1616 = vmatpush1.msra.mxu0 0.0
    %1617 = vmatprep.subr.mxu0 0.0
    %1618 = vmatpush1.msra.mxu0 0.0
    %1619 = vmatprep.subr.mxu0 0.0
    %1620 = vmatpush1.msra.mxu0 0.0
    %1621 = vmatprep.subr.mxu0 0.0
    %1622 = vmatpush1.msra.mxu0 0.0
    %1623 = vmatprep.subr.mxu0 0.0
    %1624 = vmatpush1.msra.mxu0 0.0
    %1625 = vmatprep.subr.mxu0 0.0
    %1626 = vmatpush1.msra.mxu0 0.0
    %1627 = vmatprep.subr.mxu0 0.0
    %1628 = vmatpush1.msra.mxu0 0.0
    %1629 = vmatprep.subr.mxu0 0.0
    %1630 = vmatpush1.msra.mxu0 0.0
    %1631 = vmatprep.subr.mxu0 0.0
    %1632 = vmatpush1.msra.mxu0 0.0
    %1633 = vmatprep.subr.mxu0 0.0
    %1634 = vmatpush1.msra.mxu0 0.0
    %1635 = vmatprep.subr.mxu0 0.0
    %1636 = vmatpush1.msra.mxu0 0.0
    %1637 = vmatprep.subr.mxu0 0.0
    %1638 = vmatpush1.msra.mxu0 0.0
    %1639 = vmatprep.subr.mxu0 0.0
    %1640 = vmatpush1.msra.mxu0 0.0
    %1641 = vmatprep.subr.mxu0 0.0
    %1642 = vmatpush1.msra.mxu0 0.0
    %1643 = vmatprep.subr.mxu0 0.0
    %1644 = vmatpush1.msra.mxu0 0.0
    %1645 = vmatprep.subr.mxu0 0.0
    %1646 = vmatpush1.msra.mxu0 0.0
    %1647 = vmatprep.mubr.f32.mxu0 0.0
    %1648 = vmatmul.mubr.f32.gmra.mrb[0].mxu0 %v1511
    %v1649 = vpop.f32.mrb[0].mxu0
    %v1650 = vadd.f32 0.0, %v1649
    %v1651 = vpop.f32.mrb[0].mxu0
    %v1652 = vadd.f32 0.0, %v1651
    %1653 = vdwg.mxu0
    %1654 = vmatprep.subr.mxu0 %v1522
    %1655 = vmatpush1.msra.mxu0 %v1521
    %1656 = vmatprep.subr.mxu0 %v1526
    %1657 = vmatpush1.msra.mxu0 %v1525
    %1658 = vmatprep.subr.mxu0 %v1530
    %1659 = vmatpush1.msra.mxu0 %v1529
    %1660 = vmatprep.subr.mxu0 %v1534
    %1661 = vmatpush1.msra.mxu0 %v1533
    %1662 = vmatprep.subr.mxu0 %v1538
    %1663 = vmatpush1.msra.mxu0 %v1537
    %1664 = vmatprep.subr.mxu0 %v1542
    %1665 = vmatpush1.msra.mxu0 %v1541
    %1666 = vmatprep.subr.mxu0 %v1546
    %1667 = vmatpush1.msra.mxu0 %v1545
    %1668 = vmatprep.subr.mxu0 %v1550
    %1669 = vmatpush1.msra.mxu0 %v1549
    %1670 = vmatprep.subr.mxu0 %v1554
    %1671 = vmatpush1.msra.mxu0 %v1553
    %1672 = vmatprep.subr.mxu0 %v1558
    %1673 = vmatpush1.msra.mxu0 %v1557
    %1674 = vmatprep.subr.mxu0 %v1562
    %1675 = vmatpush1.msra.mxu0 %v1561
    %1676 = vmatprep.subr.mxu0 %v1566
    %1677 = vmatpush1.msra.mxu0 %v1565
    %1678 = vmatprep.subr.mxu0 %v1570
    %1679 = vmatpush1.msra.mxu0 %v1569
    %1680 = vmatprep.subr.mxu0 %v1574
    %1681 = vmatpush1.msra.mxu0 %v1573
    %1682 = vmatprep.subr.mxu0 %v1578
    %1683 = vmatpush1.msra.mxu0 %v1577
    %1684 = vmatprep.subr.mxu0 %v1582
    %1685 = vmatpush1.msra.mxu0 %v1581
    %1686 = vmatprep.subr.mxu0 0.0
    %1687 = vmatpush1.msra.mxu0 0.0
    %1688 = vmatprep.subr.mxu0 0.0
    %1689 = vmatpush1.msra.mxu0 0.0
    %1690 = vmatprep.subr.mxu0 0.0
    %1691 = vmatpush1.msra.mxu0 0.0
    %1692 = vmatprep.subr.mxu0 0.0
    %1693 = vmatpush1.msra.mxu0 0.0
    %1694 = vmatprep.subr.mxu0 0.0
    %1695 = vmatpush1.msra.mxu0 0.0
    %1696 = vmatprep.subr.mxu0 0.0
    %1697 = vmatpush1.msra.mxu0 0.0
    %1698 = vmatprep.subr.mxu0 0.0
    %1699 = vmatpush1.msra.mxu0 0.0
    %1700 = vmatprep.subr.mxu0 0.0
    %1701 = vmatpush1.msra.mxu0 0.0
    %1702 = vmatprep.subr.mxu0 0.0
    %1703 = vmatpush1.msra.mxu0 0.0
    %1704 = vmatprep.subr.mxu0 0.0
    %1705 = vmatpush1.msra.mxu0 0.0
    %1706 = vmatprep.subr.mxu0 0.0
    %1707 = vmatpush1.msra.mxu0 0.0
    %1708 = vmatprep.subr.mxu0 0.0
    %1709 = vmatpush1.msra.mxu0 0.0
    %1710 = vmatprep.subr.mxu0 0.0
    %1711 = vmatpush1.msra.mxu0 0.0
    %1712 = vmatprep.subr.mxu0 0.0
    %1713 = vmatpush1.msra.mxu0 0.0
    %1714 = vmatprep.subr.mxu0 0.0
    %1715 = vmatpush1.msra.mxu0 0.0
    %1716 = vmatprep.subr.mxu0 0.0
    %1717 = vmatpush1.msra.mxu0 0.0
    %1718 = vmatprep.mubr.f32.mxu0 0.0
    %1719 = vmatmul.mubr.f32.gmra.mrb[0].mxu0 %v1511
    %v1720 = vpop.f32.mrb[0].mxu0
    %v1721 = vadd.f32 0.0, %v1720
    %v1722 = vpop.f32.mrb[0].mxu0
    %v1723 = vadd.f32 0.0, %v1722
    %1724 = vdwg.mxu0
    %v1725 = vadd.f32 %v1515, %v1650
    %v1726 = vadd.f32 %v1516, %v1652
    %v1727 = vadd.f32 %v1517, %v1721
    %v1728 = vadd.f32 %v1518, %v1723
    %v1729 = vxor.u32 %v1725, 2147483648
    %v1730 = vxor.u32 %v1726, 2147483648
    %v1731 = vxor.u32 %v1727, 2147483648
    %v1732 = vmul.f32 %v1729, 1.442695
    %v1733 = vpow.pop %v1732
    %v1734 = vmul.f32 %v1730, 1.442695
    %v1735 = vpow.pop %v1734
    %v1736 = vmul.f32 %v1731, 1.442695
    %v1737 = vpow.pop %v1736
    %v1738 = vadd.f32 %v1733, 1.0
    %v1739 = vadd.f32 %v1735, 1.0
    %v1740 = vadd.f32 %v1737, 1.0
    %v1741 = vrcp.pop %v1738
    %v1742 = vmul.f32 1.0, %v1741
    %v1743 = vrcp.pop %v1739
    %v1744 = vmul.f32 1.0, %v1743
    %v1745 = vrcp.pop %v1740
    %v1746 = vmul.f32 1.0, %v1745
    %v1747 = vtanh.pop %v1728
    %v1748 = vmul.f32 %v1509, %v1742
    %v1749 = vmul.f32 %v1747, %v1744
    %v1750 = vadd.f32 %v1748, %v1749
    %v1751 = vtanh.pop %v1750
    %v1752 = vmul.f32 %v1746, %v1751
    %s1753 = scalar_lea.vmem [#allocation10], 48
    %1754 = vst [vmem:[%s1753] sm:$0xff] %v1752
    %s1755 = scalar_lea.vmem [#allocation4], 224
    %v1756 = vld [vmem:[%s1755] sm:$0xff]
    %v1757 = vld [vmem:[%s1755 + $0x8] sm:$0xff]
    %v1758 = vld [vmem:[%s1755 + $0x10] sm:$0xff]
    %v1759 = vld [vmem:[%s1755 + $0x18] sm:$0xff]
    %v1760 = vld [vmem:[#allocation7] sm:$0xff]
    %v1761 = vld [vmem:[#allocation7 + $0x8] sm:$0xff]
    %v1762 = vld [vmem:[#allocation7 + $0x10] sm:$0xff]
    %v1763 = vld [vmem:[#allocation7 + $0x18] sm:$0xff]
    %v1764 = vld [vmem:[#allocation7 + $0x20] sm:$0xff]
    %v1765 = vld [vmem:[#allocation7 + $0x28] sm:$0xff]
    %v1766 = vld [vmem:[#allocation7 + $0x30] sm:$0xff]
    %v1767 = vld [vmem:[#allocation7 + $0x38] sm:$0xff]
    %v1768 = vld [vmem:[#allocation7 + $0x40] sm:$0xff]
    %v1769 = vld [vmem:[#allocation7 + $0x48] sm:$0xff]
    %v1770 = vld [vmem:[#allocation7 + $0x50] sm:$0xff]
    %v1771 = vld [vmem:[#allocation7 + $0x58] sm:$0xff]
    %v1772 = vld [vmem:[#allocation7 + $0x60] sm:$0xff]
    %v1773 = vld [vmem:[#allocation7 + $0x68] sm:$0xff]
    %v1774 = vld [vmem:[#allocation7 + $0x70] sm:$0xff]
    %v1775 = vld [vmem:[#allocation7 + $0x78] sm:$0xff]
    %v1776 = vld [vmem:[#allocation7 + $0x80] sm:$0xff]
    %v1777 = vld [vmem:[#allocation7 + $0x88] sm:$0xff]
    %v1778 = vld [vmem:[#allocation7 + $0x90] sm:$0xff]
    %v1779 = vld [vmem:[#allocation7 + $0x98] sm:$0xff]
    %v1780 = vld [vmem:[#allocation7 + $0xa0] sm:$0xff]
    %v1781 = vld [vmem:[#allocation7 + $0xa8] sm:$0xff]
    %v1782 = vld [vmem:[#allocation7 + $0xb0] sm:$0xff]
    %v1783 = vld [vmem:[#allocation7 + $0xb8] sm:$0xff]
    %v1784 = vld [vmem:[#allocation7 + $0xc0] sm:$0xff]
    %v1785 = vld [vmem:[#allocation7 + $0xc8] sm:$0xff]
    %v1786 = vld [vmem:[#allocation7 + $0xd0] sm:$0xff]
    %v1787 = vld [vmem:[#allocation7 + $0xd8] sm:$0xff]
    %v1788 = vld [vmem:[#allocation7 + $0xe0] sm:$0xff]
    %v1789 = vld [vmem:[#allocation7 + $0xe8] sm:$0xff]
    %v1790 = vld [vmem:[#allocation7 + $0xf0] sm:$0xff]
    %v1791 = vld [vmem:[#allocation7 + $0xf8] sm:$0xff]
    %v1792 = vld [vmem:[#allocation7 + $0x100] sm:$0xff]
    %v1793 = vld [vmem:[#allocation7 + $0x108] sm:$0xff]
    %v1794 = vld [vmem:[#allocation7 + $0x110] sm:$0xff]
    %v1795 = vld [vmem:[#allocation7 + $0x118] sm:$0xff]
    %v1796 = vld [vmem:[#allocation7 + $0x120] sm:$0xff]
    %v1797 = vld [vmem:[#allocation7 + $0x128] sm:$0xff]
    %v1798 = vld [vmem:[#allocation7 + $0x130] sm:$0xff]
    %v1799 = vld [vmem:[#allocation7 + $0x138] sm:$0xff]
    %v1800 = vld [vmem:[#allocation7 + $0x140] sm:$0xff]
    %v1801 = vld [vmem:[#allocation7 + $0x148] sm:$0xff]
    %v1802 = vld [vmem:[#allocation7 + $0x150] sm:$0xff]
    %v1803 = vld [vmem:[#allocation7 + $0x158] sm:$0xff]
    %v1804 = vld [vmem:[#allocation7 + $0x160] sm:$0xff]
    %v1805 = vld [vmem:[#allocation7 + $0x168] sm:$0xff]
    %v1806 = vld [vmem:[#allocation7 + $0x170] sm:$0xff]
    %v1807 = vld [vmem:[#allocation7 + $0x178] sm:$0xff]
    %v1808 = vld [vmem:[#allocation7 + $0x180] sm:$0xff]
    %v1809 = vld [vmem:[#allocation7 + $0x188] sm:$0xff]
    %v1810 = vld [vmem:[#allocation7 + $0x190] sm:$0xff]
    %v1811 = vld [vmem:[#allocation7 + $0x198] sm:$0xff]
    %v1812 = vld [vmem:[#allocation7 + $0x1a0] sm:$0xff]
    %v1813 = vld [vmem:[#allocation7 + $0x1a8] sm:$0xff]
    %v1814 = vld [vmem:[#allocation7 + $0x1b0] sm:$0xff]
    %v1815 = vld [vmem:[#allocation7 + $0x1b8] sm:$0xff]
    %v1816 = vld [vmem:[#allocation7 + $0x1c0] sm:$0xff]
    %v1817 = vld [vmem:[#allocation7 + $0x1c8] sm:$0xff]
    %v1818 = vld [vmem:[#allocation7 + $0x1d0] sm:$0xff]
    %v1819 = vld [vmem:[#allocation7 + $0x1d8] sm:$0xff]
    %v1820 = vld [vmem:[#allocation7 + $0x1e0] sm:$0xff]
    %v1821 = vld [vmem:[#allocation7 + $0x1e8] sm:$0xff]
    %v1822 = vld [vmem:[#allocation7 + $0x1f0] sm:$0xff]
    %v1823 = vld [vmem:[#allocation7 + $0x1f8] sm:$0xff]
    %1824 = vmatprep.subr.mxu0 %v1761
    %1825 = vmatpush1.msra.mxu0 %v1760
    %1826 = vmatprep.subr.mxu0 %v1765
    %1827 = vmatpush1.msra.mxu0 %v1764
    %1828 = vmatprep.subr.mxu0 %v1769
    %1829 = vmatpush1.msra.mxu0 %v1768
    %1830 = vmatprep.subr.mxu0 %v1773
    %1831 = vmatpush1.msra.mxu0 %v1772
    %1832 = vmatprep.subr.mxu0 %v1777
    %1833 = vmatpush1.msra.mxu0 %v1776
    %1834 = vmatprep.subr.mxu0 %v1781
    %1835 = vmatpush1.msra.mxu0 %v1780
    %1836 = vmatprep.subr.mxu0 %v1785
    %1837 = vmatpush1.msra.mxu0 %v1784
    %1838 = vmatprep.subr.mxu0 %v1789
    %1839 = vmatpush1.msra.mxu0 %v1788
    %1840 = vmatprep.subr.mxu0 %v1793
    %1841 = vmatpush1.msra.mxu0 %v1792
    %1842 = vmatprep.subr.mxu0 %v1797
    %1843 = vmatpush1.msra.mxu0 %v1796
    %1844 = vmatprep.subr.mxu0 %v1801
    %1845 = vmatpush1.msra.mxu0 %v1800
    %1846 = vmatprep.subr.mxu0 %v1805
    %1847 = vmatpush1.msra.mxu0 %v1804
    %1848 = vmatprep.subr.mxu0 %v1809
    %1849 = vmatpush1.msra.mxu0 %v1808
    %1850 = vmatprep.subr.mxu0 %v1813
    %1851 = vmatpush1.msra.mxu0 %v1812
    %1852 = vmatprep.subr.mxu0 %v1817
    %1853 = vmatpush1.msra.mxu0 %v1816
    %1854 = vmatprep.subr.mxu0 %v1821
    %1855 = vmatpush1.msra.mxu0 %v1820
    %1856 = vmatprep.subr.mxu0 0.0
    %1857 = vmatpush1.msra.mxu0 0.0
    %1858 = vmatprep.subr.mxu0 0.0
    %1859 = vmatpush1.msra.mxu0 0.0
    %1860 = vmatprep.subr.mxu0 0.0
    %1861 = vmatpush1.msra.mxu0 0.0
    %1862 = vmatprep.subr.mxu0 0.0
    %1863 = vmatpush1.msra.mxu0 0.0
    %1864 = vmatprep.subr.mxu0 0.0
    %1865 = vmatpush1.msra.mxu0 0.0
    %1866 = vmatprep.subr.mxu0 0.0
    %1867 = vmatpush1.msra.mxu0 0.0
    %1868 = vmatprep.subr.mxu0 0.0
    %1869 = vmatpush1.msra.mxu0 0.0
    %1870 = vmatprep.subr.mxu0 0.0
    %1871 = vmatpush1.msra.mxu0 0.0
    %1872 = vmatprep.subr.mxu0 0.0
    %1873 = vmatpush1.msra.mxu0 0.0
    %1874 = vmatprep.subr.mxu0 0.0
    %1875 = vmatpush1.msra.mxu0 0.0
    %1876 = vmatprep.subr.mxu0 0.0
    %1877 = vmatpush1.msra.mxu0 0.0
    %1878 = vmatprep.subr.mxu0 0.0
    %1879 = vmatpush1.msra.mxu0 0.0
    %1880 = vmatprep.subr.mxu0 0.0
    %1881 = vmatpush1.msra.mxu0 0.0
    %1882 = vmatprep.subr.mxu0 0.0
    %1883 = vmatpush1.msra.mxu0 0.0
    %1884 = vmatprep.subr.mxu0 0.0
    %1885 = vmatpush1.msra.mxu0 0.0
    %1886 = vmatprep.subr.mxu0 0.0
    %1887 = vmatpush1.msra.mxu0 0.0
    %1888 = vmatprep.mubr.f32.mxu0 0.0
    %1889 = vmatmul.mubr.f32.gmra.mrb[0].mxu0 %v1752
    %v1890 = vpop.f32.mrb[0].mxu0
    %v1891 = vadd.f32 0.0, %v1890
    %v1892 = vpop.f32.mrb[0].mxu0
    %v1893 = vadd.f32 0.0, %v1892
    %1894 = vdwg.mxu0
    %1895 = vmatprep.subr.mxu0 %v1763
    %1896 = vmatpush1.msra.mxu0 %v1762
    %1897 = vmatprep.subr.mxu0 %v1767
    %1898 = vmatpush1.msra.mxu0 %v1766
    %1899 = vmatprep.subr.mxu0 %v1771
    %1900 = vmatpush1.msra.mxu0 %v1770
    %1901 = vmatprep.subr.mxu0 %v1775
    %1902 = vmatpush1.msra.mxu0 %v1774
    %1903 = vmatprep.subr.mxu0 %v1779
    %1904 = vmatpush1.msra.mxu0 %v1778
    %1905 = vmatprep.subr.mxu0 %v1783
    %1906 = vmatpush1.msra.mxu0 %v1782
    %1907 = vmatprep.subr.mxu0 %v1787
    %1908 = vmatpush1.msra.mxu0 %v1786
    %1909 = vmatprep.subr.mxu0 %v1791
    %1910 = vmatpush1.msra.mxu0 %v1790
    %1911 = vmatprep.subr.mxu0 %v1795
    %1912 = vmatpush1.msra.mxu0 %v1794
    %1913 = vmatprep.subr.mxu0 %v1799
    %1914 = vmatpush1.msra.mxu0 %v1798
    %1915 = vmatprep.subr.mxu0 %v1803
    %1916 = vmatpush1.msra.mxu0 %v1802
    %1917 = vmatprep.subr.mxu0 %v1807
    %1918 = vmatpush1.msra.mxu0 %v1806
    %1919 = vmatprep.subr.mxu0 %v1811
    %1920 = vmatpush1.msra.mxu0 %v1810
    %1921 = vmatprep.subr.mxu0 %v1815
    %1922 = vmatpush1.msra.mxu0 %v1814
    %1923 = vmatprep.subr.mxu0 %v1819
    %1924 = vmatpush1.msra.mxu0 %v1818
    %1925 = vmatprep.subr.mxu0 %v1823
    %1926 = vmatpush1.msra.mxu0 %v1822
    %1927 = vmatprep.subr.mxu0 0.0
    %1928 = vmatpush1.msra.mxu0 0.0
    %1929 = vmatprep.subr.mxu0 0.0
    %1930 = vmatpush1.msra.mxu0 0.0
    %1931 = vmatprep.subr.mxu0 0.0
    %1932 = vmatpush1.msra.mxu0 0.0
    %1933 = vmatprep.subr.mxu0 0.0
    %1934 = vmatpush1.msra.mxu0 0.0
    %1935 = vmatprep.subr.mxu0 0.0
    %1936 = vmatpush1.msra.mxu0 0.0
    %1937 = vmatprep.subr.mxu0 0.0
    %1938 = vmatpush1.msra.mxu0 0.0
    %1939 = vmatprep.subr.mxu0 0.0
    %1940 = vmatpush1.msra.mxu0 0.0
    %1941 = vmatprep.subr.mxu0 0.0
    %1942 = vmatpush1.msra.mxu0 0.0
    %1943 = vmatprep.subr.mxu0 0.0
    %1944 = vmatpush1.msra.mxu0 0.0
    %1945 = vmatprep.subr.mxu0 0.0
    %1946 = vmatpush1.msra.mxu0 0.0
    %1947 = vmatprep.subr.mxu0 0.0
    %1948 = vmatpush1.msra.mxu0 0.0
    %1949 = vmatprep.subr.mxu0 0.0
    %1950 = vmatpush1.msra.mxu0 0.0
    %1951 = vmatprep.subr.mxu0 0.0
    %1952 = vmatpush1.msra.mxu0 0.0
    %1953 = vmatprep.subr.mxu0 0.0
    %1954 = vmatpush1.msra.mxu0 0.0
    %1955 = vmatprep.subr.mxu0 0.0
    %1956 = vmatpush1.msra.mxu0 0.0
    %1957 = vmatprep.subr.mxu0 0.0
    %1958 = vmatpush1.msra.mxu0 0.0
    %1959 = vmatprep.mubr.f32.mxu0 0.0
    %1960 = vmatmul.mubr.f32.gmra.mrb[0].mxu0 %v1752
    %v1961 = vpop.f32.mrb[0].mxu0
    %v1962 = vadd.f32 0.0, %v1961
    %v1963 = vpop.f32.mrb[0].mxu0
    %v1964 = vadd.f32 0.0, %v1963
    %1965 = vdwg.mxu0
    %v1966 = vadd.f32 %v1756, %v1891
    %v1967 = vadd.f32 %v1757, %v1893
    %v1968 = vadd.f32 %v1758, %v1962
    %v1969 = vadd.f32 %v1759, %v1964
    %v1970 = vxor.u32 %v1966, 2147483648
    %v1971 = vxor.u32 %v1967, 2147483648
    %v1972 = vxor.u32 %v1968, 2147483648
    %v1973 = vmul.f32 %v1970, 1.442695
    %v1974 = vpow.pop %v1973
    %v1975 = vmul.f32 %v1971, 1.442695
    %v1976 = vpow.pop %v1975
    %v1977 = vmul.f32 %v1972, 1.442695
    %v1978 = vpow.pop %v1977
    %v1979 = vadd.f32 %v1974, 1.0
    %v1980 = vadd.f32 %v1976, 1.0
    %v1981 = vadd.f32 %v1978, 1.0
    %v1982 = vrcp.pop %v1979
    %v1983 = vmul.f32 1.0, %v1982
    %v1984 = vrcp.pop %v1980
    %v1985 = vmul.f32 1.0, %v1984
    %v1986 = vrcp.pop %v1981
    %v1987 = vmul.f32 1.0, %v1986
    %v1988 = vtanh.pop %v1969
    %v1989 = vmul.f32 %v1750, %v1983
    %v1990 = vmul.f32 %v1988, %v1985
    %v1991 = vadd.f32 %v1989, %v1990
    %v1992 = vtanh.pop %v1991
    %v1993 = vmul.f32 %v1987, %v1992
    %s1994 = scalar_lea.vmem [#allocation10], 56
    %1995 = vst [vmem:[%s1994] sm:$0xff] %v1993
    %1996 = vst [vmem:[#allocation2] sm:$0xff] %v1993
    %1997 = vst [vmem:[#allocation3] sm:$0xff] %v1991
    // Predicated region
    $region34: #{tpu_custom_call.1} parent=1 // pred_check
      %p1998 = pneg %p60
    $region35: #{tpu_custom_call.1} parent=1 // pred_check_branch
      %2000 = sbr.rel (%p1998) target = $region37
    $region36: #{tpu_custom_call.1} parent=1 // pred_region
      %2001 = vst [vmem:[#allocation11] sm:$0xff] %v1991
    $region37: #{tpu_custom_call.1} parent=1 // pred_fallthru
      _
    // Predicated region
    $region38: #{tpu_custom_call.1} parent=1 // pred_check
      _
    $region39: #{tpu_custom_call.1} parent=1 // pred_check_branch
      %2003 = sbr.rel (0) target = $region41
    $region40: #{tpu_custom_call.1} parent=1 // pred_region
      %s2005 = ssub.s32 1024, 1024
      %2006 = vsyncadd [#allocation6], %s2005
      %s2007 = sshll.u32 [#allocation10], 4
      %s2008 = int_to_ptr.vmem [resolvable:$true] %s2007
      %2013 = dma.vmem_to_hbm [thread:$0]  %s2008, 1024, %s4, [#allocation6], 128, 128, 8
    $region41: #{tpu_custom_call.1} parent=1 // pred_fallthru
      _
    // Predicated region
    $region42: #{tpu_custom_call.1} parent=1 // pred_check
      _
    $region43: #{tpu_custom_call.1} parent=1 // pred_check_branch
      %2015 = sbr.rel (0) target = $region45
    $region44: #{tpu_custom_call.1} parent=1 // pred_region
      %s2017 = ssub.s32 128, 128
      %2018 = vsyncadd [#allocation12], %s2017
      %s2020 = sshll.u32 [#allocation11], 4
      %s2021 = int_to_ptr.vmem [resolvable:$true] %s2020
      %2023 = dma.vmem_to_hbm [thread:$0]  %s2021, 128, %s5, [#allocation12]
    $region45: #{tpu_custom_call.1} parent=1 // pred_fallthru
      _
    // Predicated region
    $region46: #{tpu_custom_call.1} parent=1 // pred_check
      _
    $region47: #{tpu_custom_call.1} parent=1 // pred_check_branch
      %2025 = sbr.rel (0) target = $region49
    $region48: #{tpu_custom_call.1} parent=1 // pred_region
      %2026 = dma.done [#allocation6], 1024
    $region49: #{tpu_custom_call.1} parent=1 // pred_fallthru
      _
    // Predicated region
    $region50: #{tpu_custom_call.1} parent=1 // pred_check
      _
    $region51: #{tpu_custom_call.1} parent=1 // pred_check_branch
      %2028 = sbr.rel (0) target = $region53
    $region52: #{tpu_custom_call.1} parent=1 // pred_region
      %2029 = dma.done [#allocation12], 128
    $region53: #{tpu_custom_call.1} parent=1 // pred_fallthru
      _
    %2030 = vsyncpa [#allocation5], 1
    %2031 = vsyncpa [#allocation8], 1
    %2032 = vsyncpa [#allocation6], 1
    %2033 = vsyncpa [#allocation12], 1

</llo_original>
